<compile_context>
chip_gen: v6e
topology: v6e:2x2x1
jax: 0.10.0
libtpu: 0.0.40
codegen_flags: <defaults>
</compile_context>

<pallas_src>
import jax
import jax.numpy as jnp
from jax import lax
from jax.experimental import pallas as pl
from jax.experimental.pallas import tpu as pltpu


# Head dimensions (RAW = PyTorch sizes, PAD = TPU lane/sublane aligned).
F_IN = 2048
H_RAW, H_PAD = 1000, 1024
N_RAW, N_PAD = 61, 128
K_TILE = 512                      # reduction tile over the 2048 feature dim
N_EXPERTS = 3


# ----------------------------------------------------------------------------
# Pallas kernel: one expert MLP per outer grid index, K-tiled reduction inner.
#   grid = (expert i, k-chunk)
#   hidden accumulator (B, 1024) lives in VMEM scratch across the k axis,
#   ReLU + second matmul + bias run only at the last k step (P3 pattern).
# ----------------------------------------------------------------------------
def _expert_kernel(feat_ref, w1_ref, b1_ref, w2_ref, b2_ref, out_ref, h_acc):
    k = pl.program_id(1)

    @pl.when(k == 0)
    def _():
        h_acc[...] = jnp.zeros_like(h_acc)

    # bf16 x bf16 -> f32 accumulation on the MXU.
    h_acc[...] += jnp.dot(feat_ref[...], w1_ref[0],
                          preferred_element_type=jnp.float32)

    @pl.when(k == pl.num_programs(1) - 1)
    def _():
        h = jnp.maximum(h_acc[...] + b1_ref[0], 0.0)
        out_ref[0] = (jnp.dot(h.astype(w2_ref.dtype), w2_ref[0],
                              preferred_element_type=jnp.float32)
                      + b2_ref[0])


def gate_head_pallas(feature, head_params):
    """feature: (B, 2048) f32 -> (B, 61) f32 gated mixture output."""
    W1s, B1s, W2s, B2s, Wg1, Bg1, Wg2, Bg2 = head_params
    B = feature.shape[0]

    # Gate branch (tiny: ~0.8 MB of weights) stays in plain JAX, full f32.
    gh = jax.nn.relu(feature @ Wg1 + Bg1)
    gate = jax.nn.softmax(gh @ Wg2 + Bg2, axis=-1)               # (B, 3)

    # Pad batch to a sublane multiple; stream activations in bf16 like weights.
    b_pad = max(8, ((B + 7) // 8) * 8)
    feat = jnp.zeros((b_pad, F_IN), jnp.bfloat16).at[:B].set(
        feature.astype(jnp.bfloat16))

    per_expert = pl.pallas_call(
        _expert_kernel,
        out_shape=jax.ShapeDtypeStruct((N_EXPERTS, b_pad, N_PAD), jnp.float32),
        grid_spec=pltpu.PrefetchScalarGridSpec(
            num_scalar_prefetch=0,
            grid=(N_EXPERTS, F_IN // K_TILE),
            in_specs=[
                pl.BlockSpec((b_pad, K_TILE), lambda i, k: (0, k)),     # feature
                pl.BlockSpec((1, K_TILE, H_PAD), lambda i, k: (i, k, 0)),  # W1
                pl.BlockSpec((1, 1, H_PAD), lambda i, k: (i, 0, 0)),    # b1
                pl.BlockSpec((1, H_PAD, N_PAD), lambda i, k: (i, 0, 0)),  # W2
                pl.BlockSpec((1, 1, N_PAD), lambda i, k: (i, 0, 0)),    # b2
            ],
            out_specs=pl.BlockSpec((1, b_pad, N_PAD), lambda i, k: (i, 0, 0)),
            scratch_shapes=[pltpu.VMEM((b_pad, H_PAD), jnp.float32)],
        ),
        compiler_params=pltpu.CompilerParams(
            dimension_semantics=("parallel", "arbitrary")),
    )(feat, W1s, B1s, W2s, B2s)

    # Gate-weighted mixture over experts (cheap), drop batch/output padding.
    fc = per_expert[:, :B, :N_RAW]                                # (3, B, 61)
    return jnp.einsum('ebn,be->bn', fc, gate)                     # (B, 61)


# ----------------------------------------------------------------------------
# Plain-JAX reference for the head (same bf16 quantization of expert weights,
# used to verify the Pallas kernel).
# ----------------------------------------------------------------------------
def gate_head_ref(feature, head_params):
    W1s, B1s, W2s, B2s, Wg1, Bg1, Wg2, Bg2 = head_params
    gh = jax.nn.relu(feature @ Wg1 + Bg1)
    gate = jax.nn.softmax(gh @ Wg2 + Bg2, axis=-1)                # (B, 3)
    feat_bf = feature.astype(jnp.bfloat16)
    outs = []
    for k in range(N_EXPERTS):
        h = jax.nn.relu(jnp.dot(feat_bf, W1s[k],
                                preferred_element_type=jnp.float32) + B1s[k])
        fc = jnp.dot(h.astype(jnp.bfloat16), W2s[k],
                     preferred_element_type=jnp.float32) + B2s[k]
        outs.append(fc[:, :N_RAW])
    fc_out = jnp.stack(outs, axis=-1)                             # (B, 61, 3)
    return jnp.sum(fc_out * gate[:, None, :], axis=-1)            # (B, 61)


# ----------------------------------------------------------------------------
# ResNet-101 backbone (torchvision layout, eval-mode batchnorm), plain JAX.
# TODO(synk): backbone convolutions (101-layer CNN) are kept in plain JAX via
#             lax.conv_general_dilated; only the model-specific gated head is
#             implemented as a Pallas kernel.
# ----------------------------------------------------------------------------
def conv2d(x, w, stride=1, padding=0):
    return lax.conv_general_dilated(
        x, w, window_strides=(stride, stride),
        padding=[(padding, padding), (padding, padding)],
        dimension_numbers=("NCHW", "OIHW", "NCHW"))


def batchnorm_eval(x, gamma, beta, mean, var, eps=1e-5):
    inv = gamma / jnp.sqrt(var + eps)
    return x * inv[None, :, None, None] + (beta - mean * inv)[None, :, None, None]


class ParamGen:
    """Deterministic parameter generator (He init for convs, PyTorch-style
    uniform for linears, identity running stats for eval batchnorm)."""

    def __init__(self, key):
        self.key = key
        self.count = 0

    def _next_key(self):
        self.count += 1
        return jax.random.fold_in(self.key, self.count)

    def conv(self, cout, cin, kh, kw):
        fan_in = cin * kh * kw
        std = (2.0 / fan_in) ** 0.5
        return std * jax.random.normal(self._next_key(), (cout, cin, kh, kw),
                                       jnp.float32)

    def linear(self, cin, cout):
        bound = 1.0 / (cin ** 0.5)
        w = jax.random.uniform(self._next_key(), (cin, cout), jnp.float32,
                               -bound, bound)
        b = jax.random.uniform(self._next_key(), (cout,), jnp.float32,
                               -bound, bound)
        return w, b

    def bn(self, c):
        return (jnp.ones((c,), jnp.float32), jnp.zeros((c,), jnp.float32),
                jnp.zeros((c,), jnp.float32), jnp.ones((c,), jnp.float32))


def make_bottleneck(pg, inplanes, planes, stride):
    expansion = 4
    p = {
        "conv1": pg.conv(planes, inplanes, 1, 1), "bn1": pg.bn(planes),
        "conv2": pg.conv(planes, planes, 3, 3), "bn2": pg.bn(planes),
        "conv3": pg.conv(planes * expansion, planes, 1, 1),
        "bn3": pg.bn(planes * expansion),
        "stride": stride,
    }
    if stride != 1 or inplanes != planes * expansion:
        p["down_conv"] = pg.conv(planes * expansion, inplanes, 1, 1)
        p["down_bn"] = pg.bn(planes * expansion)
    return p


def bottleneck_fwd(p, x):
    identity = x
    out = jax.nn.relu(batchnorm_eval(conv2d(x, p["conv1"]), *p["bn1"]))
    out = jax.nn.relu(batchnorm_eval(
        conv2d(out, p["conv2"], stride=p["stride"], padding=1), *p["bn2"]))
    out = batchnorm_eval(conv2d(out, p["conv3"]), *p["bn3"])
    if "down_conv" in p:
        identity = batchnorm_eval(
            conv2d(x, p["down_conv"], stride=p["stride"]), *p["down_bn"])
    return jax.nn.relu(out + identity)


def make_resnet101(pg):
    params = {"conv1": pg.conv(64, 3, 7, 7), "bn1": pg.bn(64)}
    layers = []
    inplanes = 64
    cfg = [(64, 3, 1), (128, 4, 2), (256, 23, 2), (512, 3, 2)]  # resnet101
    for planes, nblocks, stride in cfg:
        blocks = []
        for b in range(nblocks):
            s = stride if b == 0 else 1
            blocks.append(make_bottleneck(pg, inplanes, planes, s))
            inplanes = planes * 4
        layers.append(blocks)
    params["layers"] = layers
    return params


def resnet101_fwd(params, x):
    x = conv2d(x, params["conv1"], stride=2, padding=3)
    x = jax.nn.relu(batchnorm_eval(x, *params["bn1"]))
    x = lax.reduce_window(x, -jnp.inf, lax.max,
                          (1, 1, 3, 3), (1, 1, 2, 2),
                          [(0, 0), (0, 0), (1, 1), (1, 1)])
    for blocks in params["layers"]:
        for p in blocks:
            x = bottleneck_fwd(p, x)
    # AdaptiveAvgPool2d((1,1)) followed by .mean(-1).mean(-1) == spatial mean.
    return jnp.mean(x, axis=(2, 3))                              # (B, 2048)


def make_head_params(pg):
    Wg1, bg1 = pg.linear(2048, 100)
    Wg2, bg2 = pg.linear(100, 3)
    w1, b1, w2, b2 = [], [], [], []
    for _ in range(N_EXPERTS):
        wa, ba = pg.linear(2048, 1000)
        wb, bb = pg.linear(1000, 61)
        # Zero-pad hidden 1000->1024 and output 61->128 (math unchanged);
        # stream the big expert weights in bf16 (f32 accumulation in kernel).
        wa = jnp.pad(wa, ((0, 0), (0, H_PAD - H_RAW))).astype(jnp.bfloat16)
        ba = jnp.pad(ba, ((0, H_PAD - H_RAW),))
        wb = jnp.pad(wb, ((0, H_PAD - H_RAW),
                          (0, N_PAD - N_RAW))).astype(jnp.bfloat16)
        bb = jnp.pad(bb, ((0, N_PAD - N_RAW),))
        w1.append(wa); b1.append(ba); w2.append(wb); b2.append(bb)
    return (jnp.stack(w1),                       # (3, 2048, 1024) bf16
            jnp.stack(b1)[:, None, :],           # (3, 1, 1024)    f32
            jnp.stack(w2),                       # (3, 1024, 128)  bf16
            jnp.stack(b2)[:, None, :],           # (3, 1, 128)     f32
            Wg1, bg1[None, :], Wg2, bg2[None, :])


def gate_model_big_forward(resnet_params, head_params, x):
    feature = resnet101_fwd(resnet_params, x)                    # (B, 2048)
    return feature, gate_head_pallas(feature, head_params)       # (B, 61)


if __name__ == "__main__":
    key = jax.random.PRNGKey(0)
    pg = ParamGen(jax.random.fold_in(key, 1))

    resnet_params = make_resnet101(pg)
    head_params = make_head_params(pg)

    # Example input: batch=2, RGB 32x32 image (NCHW, like PyTorch).
    x = jax.random.normal(jax.random.fold_in(key, 2), (2, 3, 32, 32),
                          jnp.float32)

    feature, gate_output = gate_model_big_forward(resnet_params, head_params, x)
    gate_output = jax.block_until_ready(gate_output)
    assert gate_output.shape == (2, 61), gate_output.shape

    # Verify the Pallas head against a plain-JAX reference using the same
    # bf16-quantized expert weights (tolerance covers f32-accumulation-order
    # differences between the K-tiled kernel and XLA's single dot).
    ref = jax.block_until_ready(gate_head_ref(feature, head_params))
    if not jnp.allclose(gate_output, ref, rtol=1e-2, atol=1e-2):
        raise AssertionError("Pallas head kernel mismatch vs reference")

    print("KERNEL_OK")
</pallas_src>

<mosaic_0001>
module attributes {stable_mosaic.version = 11 : i64} {
  func.func @_expert_kernel(%arg0: i32, %arg1: i32, %arg2: memref<8x512xbf16, #tpu.memory_space<vmem>>, %arg3: memref<1x512x1024xbf16, #tpu.memory_space<vmem>>, %arg4: memref<1x1x1024xf32, #tpu.memory_space<vmem>>, %arg5: memref<1x1024x128xbf16, #tpu.memory_space<vmem>>, %arg6: memref<1x1x128xf32, #tpu.memory_space<vmem>>, %arg7: memref<1x8x128xf32, #tpu.memory_space<vmem>>, %arg8: memref<8x1024xf32, #tpu.memory_space<vmem>>) attributes {dimension_semantics = [#tpu.dimension_semantics<parallel>, #tpu.dimension_semantics<arbitrary>], iteration_bounds = array<i64: 3, 4>, scalar_prefetch = 0 : i64, scratch_operands = 1 : i64, tpu.core_type = #tpu.core_type<tc>, window_params = [{transform_indices = @transform_0, window_bounds = array<i64: 8, 512>}, {transform_indices = @transform_1, window_bounds = array<i64: 1, 512, 1024>}, {transform_indices = @transform_2, window_bounds = array<i64: 1, 1, 1024>}, {transform_indices = @transform_3, window_bounds = array<i64: 1, 1024, 128>}, {transform_indices = @transform_4, window_bounds = array<i64: 1, 1, 128>}, {transform_indices = @transform_5, window_bounds = array<i64: 1, 8, 128>}]} {
    %c0_i32 = arith.constant 0 : i32
    %0 = arith.cmpi eq, %arg1, %c0_i32 : i32
    %1 = arith.extui %0 : i1 to i32
    %c0_i32_0 = arith.constant 0 : i32
    %2 = arith.cmpi ne, %1, %c0_i32_0 : i32
    scf.if %2 {
      %cst_10 = arith.constant 0.000000e+00 : f32
      %13 = vector.broadcast %cst_10 : f32 to vector<8x1024xf32>
      %c0_11 = arith.constant 0 : index
      %c0_12 = arith.constant 0 : index
      %14 = vector.load %arg8[%c0_11, %c0_12] : memref<8x1024xf32, #tpu.memory_space<vmem>>, vector<8x1024xf32>
      tpu.vector_store %arg8[%c0_11, %c0_12], %13 {strides = array<i32>} : memref<8x1024xf32, #tpu.memory_space<vmem>>, vector<8x1024xf32>,
    } else {
    }
    %c0 = arith.constant 0 : index
    %c0_1 = arith.constant 0 : index
    %3 = vector.load %arg8[%c0, %c0_1] : memref<8x1024xf32, #tpu.memory_space<vmem>>, vector<8x1024xf32>
    %c0_2 = arith.constant 0 : index
    %c0_3 = arith.constant 0 : index
    %4 = vector.load %arg2[%c0_2, %c0_3] : memref<8x512xbf16, #tpu.memory_space<vmem>>, vector<8x512xbf16>
    %c0_4 = arith.constant 0 : index
    %c0_5 = arith.constant 0 : index
    %c0_6 = arith.constant 0 : index
    %5 = vector.load %arg3[%c0_4, %c0_5, %c0_6] : memref<1x512x1024xbf16, #tpu.memory_space<vmem>>, vector<1x512x1024xbf16>
    %6 = vector.shape_cast %5 : vector<1x512x1024xbf16> to vector<512x1024xbf16>
    %cst = arith.constant dense<0.000000e+00> : vector<8x1024xf32>
    %7 = tpu.matmul %4, %6, %cst {dimension_numbers = #tpu.dot_dimension_numbers<[1], [0], [0], [1], [0, 0, 1, 1], [], []>} : vector<8x512xbf16>, vector<512x1024xbf16>, vector<8x1024xf32> -> vector<8x1024xf32>
    %8 = arith.addf %3, %7 : vector<8x1024xf32>
    %c0_7 = arith.constant 0 : index
    %c0_8 = arith.constant 0 : index
    %9 = vector.load %arg8[%c0_7, %c0_8] : memref<8x1024xf32, #tpu.memory_space<vmem>>, vector<8x1024xf32>
    tpu.vector_store %arg8[%c0_7, %c0_8], %8 {strides = array<i32>} : memref<8x1024xf32, #tpu.memory_space<vmem>>, vector<8x1024xf32>,
    %c3_i32 = arith.constant 3 : i32
    %10 = arith.cmpi eq, %arg1, %c3_i32 : i32
    %11 = arith.extui %10 : i1 to i32
    %c0_i32_9 = arith.constant 0 : i32
    %12 = arith.cmpi ne, %11, %c0_i32_9 : i32
    scf.if %12 {
      %c0_10 = arith.constant 0 : index
      %c0_11 = arith.constant 0 : index
      %13 = vector.load %arg8[%c0_10, %c0_11] : memref<8x1024xf32, #tpu.memory_space<vmem>>, vector<8x1024xf32>
      %c0_12 = arith.constant 0 : index
      %c0_13 = arith.constant 0 : index
      %c0_14 = arith.constant 0 : index
      %14 = vector.load %arg4[%c0_12, %c0_13, %c0_14] : memref<1x1x1024xf32, #tpu.memory_space<vmem>>, vector<1x1x1024xf32>
      %15 = vector.shape_cast %14 : vector<1x1x1024xf32> to vector<1x1024xf32>
      %16 = vector.broadcast %15 : vector<1x1024xf32> to vector<8x1024xf32>
      %17 = arith.addf %13, %16 : vector<8x1024xf32>
      %cst_15 = arith.constant 0.000000e+00 : f32
      %18 = vector.broadcast %cst_15 : f32 to vector<8x1024xf32>
      %19 = arith.maximumf %17, %18 : vector<8x1024xf32>
      %20 = arith.truncf %19 : vector<8x1024xf32> to vector<8x1024xbf16>
      %c0_16 = arith.constant 0 : index
      %c0_17 = arith.constant 0 : index
      %c0_18 = arith.constant 0 : index
      %21 = vector.load %arg5[%c0_16, %c0_17, %c0_18] : memref<1x1024x128xbf16, #tpu.memory_space<vmem>>, vector<1x1024x128xbf16>
      %22 = vector.shape_cast %21 : vector<1x1024x128xbf16> to vector<1024x128xbf16>
      %cst_19 = arith.constant dense<0.000000e+00> : vector<8x128xf32>
      %23 = tpu.matmul %20, %22, %cst_19 {dimension_numbers = #tpu.dot_dimension_numbers<[1], [0], [0], [1], [0, 0, 1, 1], [], []>} : vector<8x1024xbf16>, vector<1024x128xbf16>, vector<8x128xf32> -> vector<8x128xf32>
      %c0_20 = arith.constant 0 : index
      %c0_21 = arith.constant 0 : index
      %c0_22 = arith.constant 0 : index
      %24 = vector.load %arg6[%c0_20, %c0_21, %c0_22] : memref<1x1x128xf32, #tpu.memory_space<vmem>>, vector<1x1x128xf32>
      %25 = vector.shape_cast %24 : vector<1x1x128xf32> to vector<1x128xf32>
      %26 = vector.broadcast %25 : vector<1x128xf32> to vector<8x128xf32>
      %27 = arith.addf %23, %26 : vector<8x128xf32>
      %c0_23 = arith.constant 0 : index
      %c0_24 = arith.constant 0 : index
      %c0_25 = arith.constant 0 : index
      %28 = vector.load %arg7[%c0_23, %c0_24, %c0_25] : memref<1x8x128xf32, #tpu.memory_space<vmem>>, vector<1x8x128xf32>
      %29 = vector.shape_cast %28 : vector<1x8x128xf32> to vector<8x128xf32>
      %30 = vector.shape_cast %27 : vector<8x128xf32> to vector<1x8x128xf32>
      tpu.vector_store %arg7[%c0_23, %c0_24, %c0_25], %30 {strides = array<i32>} : memref<1x8x128xf32, #tpu.memory_space<vmem>>, vector<1x8x128xf32>,
    } else {
    }
    return
  }
  func.func @transform_0(%arg0: i32, %arg1: i32) -> (i32, i32) {
    %c0_i32 = arith.constant 0 : i32
    %c0_i32_0 = arith.constant 0 : i32
    return %c0_i32, %arg1 : i32, i32
  }
  func.func @transform_1(%arg0: i32, %arg1: i32) -> (i32, i32, i32) {
    %c0_i32 = arith.constant 0 : i32
    %c0_i32_0 = arith.constant 0 : i32
    return %arg0, %arg1, %c0_i32 : i32, i32, i32
  }
  func.func @transform_2(%arg0: i32, %arg1: i32) -> (i32, i32, i32) {
    %c0_i32 = arith.constant 0 : i32
    %c0_i32_0 = arith.constant 0 : i32
    %c0_i32_1 = arith.constant 0 : i32
    return %arg0, %c0_i32, %c0_i32_0 : i32, i32, i32
  }
  func.func @transform_3(%arg0: i32, %arg1: i32) -> (i32, i32, i32) {
    %c0_i32 = arith.constant 0 : i32
    %c0_i32_0 = arith.constant 0 : i32
    %c0_i32_1 = arith.constant 0 : i32
    return %arg0, %c0_i32, %c0_i32_0 : i32, i32, i32
  }
  func.func @transform_4(%arg0: i32, %arg1: i32) -> (i32, i32, i32) {
    %c0_i32 = arith.constant 0 : i32
    %c0_i32_0 = arith.constant 0 : i32
    %c0_i32_1 = arith.constant 0 : i32
    return %arg0, %c0_i32, %c0_i32_0 : i32, i32, i32
  }
  func.func @transform_5(%arg0: i32, %arg1: i32) -> (i32, i32, i32) {
    %c0_i32 = arith.constant 0 : i32
    %c0_i32_0 = arith.constant 0 : i32
    %c0_i32_1 = arith.constant 0 : i32
    return %arg0, %c0_i32, %c0_i32_0 : i32, i32, i32
  }
}

</mosaic_0001>

<llo_original>
// kernel: tpu_custom_call.1
$region0: #{tpu_custom_call.1}
  #allocation0 [shape = 'u32[]', space=smem, size = 0x4, offset = 0x4, fixed_abs, tag = 'smem constant byte address 0x4 - core index']
  #allocation1 [shape = 'u32[144,128]{1,0:T(1,128)}', space=vmem, size = 0x12000, scoped, tag = 'internal scratch']
  #allocation2 [shape = 'f32[8,1024]{1,0:T(8,128)}', space=vmem, size = 0x8000, scoped, tag = 'scratch operand']
  %s0 = inlined_call_operand.hbm [shape: bf16[8,2048], index: 0, kind: input, shape index: {}]
  %s1 = inlined_call_operand.hbm [shape: bf16[3,2048,1024], index: 1, kind: input, shape index: {}]
  %s2 = inlined_call_operand.hbm [shape: f32[3,1,1024], index: 2, kind: input, shape index: {}]
  %s3 = inlined_call_operand.hbm [shape: bf16[3,1024,128], index: 3, kind: input, shape index: {}]
  %s4 = inlined_call_operand.hbm [shape: f32[3,1,128], index: 4, kind: input, shape index: {}]
  %s5 = inlined_call_operand.hbm [shape: f32[3,8,128], index: 5, kind: output, shape index: {}]
  %s6 = sld [smem:[#allocation0]]
  $region81: #{tpu_custom_call.1} parent=0
    _
  %s8 = ssub.s32 1, %s6
  %s9 = scalar_select 0, %s8, %s6
  $region1: #{tpu_custom_call.1} parent=0
    #allocation3 [shape = 'u8[16384]{0}', space=vmem, size = 0x4000, scoped, tag = 'input window, operand 0']
    #allocation4 [shape = 's32[2]{0}', space=sflag, size = 0x8, scoped, tag = 'scoped memory for tpu_custom_call.1']
    #allocation5 [shape = 's32[2]{0}', space=sflag, size = 0x8, scoped, tag = 'scoped memory for tpu_custom_call.1']
    #allocation6 [shape = 'u8[2097152]{0}', space=vmem, size = 0x200000, scoped, tag = 'input window, operand 1']
    #allocation7 [shape = 's32[2]{0}', space=sflag, size = 0x8, scoped, tag = 'scoped memory for tpu_custom_call.1']
    #allocation8 [shape = 'u8[8192]{0}', space=vmem, size = 0x2000, scoped, tag = 'input window, operand 2']
    #allocation9 [shape = 'u8[524288]{0}', space=vmem, size = 0x80000, scoped, tag = 'input window, operand 3']
    #allocation10 [shape = 's32[2]{0}', space=sflag, size = 0x8, scoped, tag = 'scoped memory for tpu_custom_call.1']
    #allocation11 [shape = 'u8[1024]{0}', space=vmem, size = 0x400, scoped, tag = 'input window, operand 4']
    #allocation12 [shape = 'u8[8192]{0}', space=vmem, size = 0x2000, scoped, tag = 'output window, operand 0']
    %10 = vsyncpa [#allocation4], 0
    %s11 = scalar_lea.sflag [#allocation4], 1
    %12 = vsyncpa %s11, 0
    %13 = vsyncpa [#allocation7], 0
    %s14 = scalar_lea.sflag [#allocation7], 1
    %15 = vsyncpa %s14, 0
    %16 = vsyncpa [#allocation10], 0
    %s17 = scalar_lea.sflag [#allocation10], 1
    %18 = vsyncpa %s17, 0
    %19 = vsyncpa [#allocation5], 0
    %s20 = scalar_lea.sflag [#allocation5], 1
    %21 = vsyncpa %s20, 0
    loop: start=0, step=1, limit=14
    $region2: #{tpu_custom_call.1} parent=1 // loop_pre_header
      _
    $region3: #{tpu_custom_call.1} parent=1 // loop_header
      %s23 = sphi 0, %s27
      %p24 = scmp.ge.s32.totalorder %s23, 14
      %s30 = sphi 0, %s42
      %s31 = sphi 0, %s38
      %s32 = sphi 0, %s30
      %s33 = sphi 0, %s31
      %s34 = sphi 0, %s32
      %s35 = sphi 0, %s33
      %s45 = sphi 0, %s47
      %s48 = sphi 0, %s45
      %s49 = sphi 0, %s48
      %s65 = sphi 0, %s49
      %s73 = sphi 0, %s75
      %s76 = sphi 0, %s73
      %s77 = sphi 0, %s76
      %s93 = sphi 0, %s77
      %s99 = sphi 0, %s101
      %s102 = sphi 0, %s99
      %s103 = sphi 0, %s102
      %s119 = sphi 0, %s103
      %s125 = sphi 0, %s127
      %s128 = sphi 0, %s125
      %s129 = sphi 0, %s128
      %s145 = sphi 0, %s129
      %s151 = sphi 0, %s153
      %s154 = sphi 0, %s151
      %s155 = sphi 0, %s154
      %s171 = sphi 0, %s155
      %s177 = sphi 0, %s179
      %s180 = sphi 0, %s177
      %s181 = sphi 0, %s180
      %s197 = sphi 0, %s181
    $region4: #{tpu_custom_call.1} parent=1 // loop_header_branch
      %26 = sbr.rel (%p24) target = $region8
    $region5: #{tpu_custom_call.1} parent=1 // loop_body
      %s28 = ssub.s32 %s23, 1
      %s29 = ssub.s32 %s23, 2
      %s36 = sadd.s32 1, %s31
      %p37 = scmp.ge.s32.totalorder %s36, 4
      %s38 = scalar_select %p37, 0, %s36
      %s39 = sadd.s32 1, %s30
      %s40 = scalar_select %p37, %s39, %s30
      %p41 = scmp.ge.s32.totalorder %s40, 3
      %s42 = scalar_select %p41, 0, %s40
      %s43 = ssub.s32 %s31, %s38
      %p44 = scmp.eq.s32.totalorder %s43, 0
      %s46 = sadd.s32 %s45, 1
      %s47 = scalar_select %p44, %s45, %s46
      %p50 = pneg %p44
      %p51 = scmp.eq.s32.totalorder %s23, 11
      %p52 = por %p50, %p51
      %p53 = scmp.ne.s32.totalorder %s45, %s48
      %p54 = scmp.eq.s32.totalorder %s23, 0
      %p55 = por %p53, %p54
      %p56 = scmp.ne.s32.totalorder %s45, %s48
      %p57 = scmp.eq.s32.totalorder %s28, 11
      %p58 = por %p56, %p57
      %p59 = scmp.ne.s32.totalorder %s48, %s49
      %p60 = scmp.eq.s32.totalorder %s28, 0
      %p61 = por %p59, %p60
      %p62 = scmp.ne.s32.totalorder %s48, %s49
      %p63 = scmp.eq.s32.totalorder %s29, 11
      %p64 = por %p62, %p63
      %p66 = scmp.ne.s32.totalorder %s49, %s65
      %p67 = scmp.eq.s32.totalorder %s29, 0
      %p68 = por %p66, %p67
      %s69 = ssub.s32 %s30, %s42
      %s70 = ssub.s32 %s31, %s38
      %s71 = sor.u32 %s69, %s70
      %p72 = scmp.eq.s32.totalorder %s71, 0
      %s74 = sadd.s32 %s73, 1
      %s75 = scalar_select %p72, %s73, %s74
      %p78 = pneg %p72
      %p79 = scmp.eq.s32.totalorder %s23, 11
      %p80 = por %p78, %p79
      %p81 = scmp.ne.s32.totalorder %s73, %s76
      %p82 = scmp.eq.s32.totalorder %s23, 0
      %p83 = por %p81, %p82
      %p84 = scmp.ne.s32.totalorder %s73, %s76
      %p85 = scmp.eq.s32.totalorder %s28, 11
      %p86 = por %p84, %p85
      %p87 = scmp.ne.s32.totalorder %s76, %s77
      %p88 = scmp.eq.s32.totalorder %s28, 0
      %p89 = por %p87, %p88
      %p90 = scmp.ne.s32.totalorder %s76, %s77
      %p91 = scmp.eq.s32.totalorder %s29, 11
      %p92 = por %p90, %p91
      %p94 = scmp.ne.s32.totalorder %s77, %s93
      %p95 = scmp.eq.s32.totalorder %s29, 0
      %p96 = por %p94, %p95
      %s97 = ssub.s32 %s30, %s42
      %p98 = scmp.eq.s32.totalorder %s97, 0
      %s100 = sadd.s32 %s99, 1
      %s101 = scalar_select %p98, %s99, %s100
      %p104 = pneg %p98
      %p105 = scmp.eq.s32.totalorder %s23, 11
      %p106 = por %p104, %p105
      %p107 = scmp.ne.s32.totalorder %s99, %s102
      %p108 = scmp.eq.s32.totalorder %s23, 0
      %p109 = por %p107, %p108
      %p110 = scmp.ne.s32.totalorder %s99, %s102
      %p111 = scmp.eq.s32.totalorder %s28, 11
      %p112 = por %p110, %p111
      %p113 = scmp.ne.s32.totalorder %s102, %s103
      %p114 = scmp.eq.s32.totalorder %s28, 0
      %p115 = por %p113, %p114
      %p116 = scmp.ne.s32.totalorder %s102, %s103
      %p117 = scmp.eq.s32.totalorder %s29, 11
      %p118 = por %p116, %p117
      %p120 = scmp.ne.s32.totalorder %s103, %s119
      %p121 = scmp.eq.s32.totalorder %s29, 0
      %p122 = por %p120, %p121
      %s123 = ssub.s32 %s30, %s42
      %p124 = scmp.eq.s32.totalorder %s123, 0
      %s126 = sadd.s32 %s125, 1
      %s127 = scalar_select %p124, %s125, %s126
      %p130 = pneg %p124
      %p131 = scmp.eq.s32.totalorder %s23, 11
      %p132 = por %p130, %p131
      %p133 = scmp.ne.s32.totalorder %s125, %s128
      %p134 = scmp.eq.s32.totalorder %s23, 0
      %p135 = por %p133, %p134
      %p136 = scmp.ne.s32.totalorder %s125, %s128
      %p137 = scmp.eq.s32.totalorder %s28, 11
      %p138 = por %p136, %p137
      %p139 = scmp.ne.s32.totalorder %s128, %s129
      %p140 = scmp.eq.s32.totalorder %s28, 0
      %p141 = por %p139, %p140
      %p142 = scmp.ne.s32.totalorder %s128, %s129
      %p143 = scmp.eq.s32.totalorder %s29, 11
      %p144 = por %p142, %p143
      %p146 = scmp.ne.s32.totalorder %s129, %s145
      %p147 = scmp.eq.s32.totalorder %s29, 0
      %p148 = por %p146, %p147
      %s149 = ssub.s32 %s30, %s42
      %p150 = scmp.eq.s32.totalorder %s149, 0
      %s152 = sadd.s32 %s151, 1
      %s153 = scalar_select %p150, %s151, %s152
      %p156 = pneg %p150
      %p157 = scmp.eq.s32.totalorder %s23, 11
      %p158 = por %p156, %p157
      %p159 = scmp.ne.s32.totalorder %s151, %s154
      %p160 = scmp.eq.s32.totalorder %s23, 0
      %p161 = por %p159, %p160
      %p162 = scmp.ne.s32.totalorder %s151, %s154
      %p163 = scmp.eq.s32.totalorder %s28, 11
      %p164 = por %p162, %p163
      %p165 = scmp.ne.s32.totalorder %s154, %s155
      %p166 = scmp.eq.s32.totalorder %s28, 0
      %p167 = por %p165, %p166
      %p168 = scmp.ne.s32.totalorder %s154, %s155
      %p169 = scmp.eq.s32.totalorder %s29, 11
      %p170 = por %p168, %p169
      %p172 = scmp.ne.s32.totalorder %s155, %s171
      %p173 = scmp.eq.s32.totalorder %s29, 0
      %p174 = por %p172, %p173
      %s175 = ssub.s32 %s30, %s42
      %p176 = scmp.eq.s32.totalorder %s175, 0
      %s178 = sadd.s32 %s177, 1
      %s179 = scalar_select %p176, %s177, %s178
      %p182 = pneg %p176
      %p183 = scmp.eq.s32.totalorder %s23, 11
      %p184 = por %p182, %p183
      %p185 = scmp.ne.s32.totalorder %s177, %s180
      %p186 = scmp.eq.s32.totalorder %s23, 0
      %p187 = por %p185, %p186
      %p188 = scmp.ne.s32.totalorder %s177, %s180
      %p189 = scmp.eq.s32.totalorder %s28, 11
      %p190 = por %p188, %p189
      %p191 = scmp.ne.s32.totalorder %s180, %s181
      %p192 = scmp.eq.s32.totalorder %s28, 0
      %p193 = por %p191, %p192
      %p194 = scmp.ne.s32.totalorder %s180, %s181
      %p195 = scmp.eq.s32.totalorder %s29, 11
      %p196 = por %p194, %p195
      %p198 = scmp.ne.s32.totalorder %s181, %s197
      %p199 = scmp.eq.s32.totalorder %s29, 0
      %p200 = por %p198, %p199
      %p201 = scmp.le.s32.totalorder 1, %s23
      %p202 = scmp.lt.s32.totalorder %s23, 13
      %p203 = pnand %p201, %p202
      %p204 = pneg %p203
      // Predicated region
      $region9: #{tpu_custom_call.1} parent=5 // pred_check
        _
      $region10: #{tpu_custom_call.1} parent=5 // pred_check_branch
        %206 = sbr.rel (%p203) target = $region12
      $region11: #{tpu_custom_call.1} parent=5 // pred_region
        %s207 = ssub.s32 %s23, 1
      $region12: #{tpu_custom_call.1} parent=5 // pred_fallthru
        _
      %p208 = scmp.lt.s32.totalorder %s23, 12
      // Predicated region
      $region13: #{tpu_custom_call.1} parent=5 // pred_check
        %p209 = pneg %p208
      $region14: #{tpu_custom_call.1} parent=5 // pred_check_branch
        %211 = sbr.rel (%p209) target = $region16
      $region15: #{tpu_custom_call.1} parent=5 // pred_region
        // Predicated region
        $region17: #{tpu_custom_call.1} parent=15 // pred_check
          %p212 = pneg %p55
        $region18: #{tpu_custom_call.1} parent=15 // pred_check_branch
          %214 = sbr.rel (%p212) target = $region20
        $region19: #{tpu_custom_call.1} parent=15 // pred_region
          %s215 = sand.u32 %s45, 1
          %s216 = scalar_lea.sflag [#allocation4], %s215
          %s217 = sand.u32 %s45, 1
          %s218 = smul.addr %s217, 16
          %s219 = scalar_lea.vmem [#allocation3], %s218
          %s220 = smul.u32 4, %s31
          %s222 = ssub.s32 256, 256
          %223 = vsyncadd %s216, %s222
          %s224 = smul.addr %s220, 64
          %s225 = scalar_lea.hbm %s0, %s224
          %s227 = sshll.u32 %s219, 4
          %s228 = int_to_ptr.vmem [resolvable:$true] %s227
          %230 = dma.hbm_to_vmem [thread:$0]  %s225, 256, %s228, %s216
        $region20: #{tpu_custom_call.1} parent=15 // pred_fallthru
          _
        // Predicated region
        $region21: #{tpu_custom_call.1} parent=15 // pred_check
          %p231 = pneg %p83
        $region22: #{tpu_custom_call.1} parent=15 // pred_check_branch
          %233 = sbr.rel (%p231) target = $region24
        $region23: #{tpu_custom_call.1} parent=15 // pred_region
          %s234 = sand.u32 %s23, 1
          %s235 = scalar_lea.sflag [#allocation7], %s234
          %s236 = sand.u32 %s73, 1
          %s237 = smul.addr %s236, 2048
          %s238 = scalar_lea.vmem [#allocation6], %s237
          %s239 = smul.u32 64, %s31
          %s241 = ssub.s32 32768, 32768
          %242 = vsyncadd %s235, %s241
          %s243 = smul.addr %s239, 8
          %s244 = smul.addr %s30, 2048
          %s245 = sadd.s32 %s243, %s244
          %s246 = smul.addr %s245, 64
          %s247 = scalar_lea.hbm %s1, %s246
          %s248 = sshll.u32 %s238, 4
          %s249 = int_to_ptr.vmem [resolvable:$true] %s248
          %254 = dma.hbm_to_vmem [thread:$0]  %s247, 32768, %s249, %s235, 512, 512, 32
        $region24: #{tpu_custom_call.1} parent=15 // pred_fallthru
          _
        // Predicated region
        $region25: #{tpu_custom_call.1} parent=15 // pred_check
          %p255 = pneg %p109
        $region26: #{tpu_custom_call.1} parent=15 // pred_check_branch
          %257 = sbr.rel (%p255) target = $region28
        $region27: #{tpu_custom_call.1} parent=15 // pred_region
          %s258 = sand.u32 %s23, 1
          %s259 = scalar_lea.sflag [#allocation7], %s258
          %s260 = sand.u32 %s99, 1
          %s261 = smul.addr %s260, 8
          %s262 = scalar_lea.vmem [#allocation8], %s261
          %s264 = ssub.s32 128, 128
          %265 = vsyncadd %s259, %s264
          %s266 = smul.addr %s30, 8
          %s267 = smul.addr %s266, 16
          %s268 = scalar_lea.hbm %s2, %s267
          %s270 = sshll.u32 %s262, 4
          %s271 = int_to_ptr.vmem [resolvable:$true] %s270
          %273 = dma.hbm_to_vmem [thread:$0]  %s268, 128, %s271, %s259
        $region28: #{tpu_custom_call.1} parent=15 // pred_fallthru
          _
        // Predicated region
        $region29: #{tpu_custom_call.1} parent=15 // pred_check
          %p274 = pneg %p135
        $region30: #{tpu_custom_call.1} parent=15 // pred_check_branch
          %276 = sbr.rel (%p274) target = $region32
        $region31: #{tpu_custom_call.1} parent=15 // pred_region
          %s277 = sand.u32 %s23, 1
          %s278 = scalar_lea.sflag [#allocation10], %s277
          %s279 = sand.u32 %s125, 1
          %s280 = smul.addr %s279, 512
          %s281 = scalar_lea.vmem [#allocation9], %s280
          %s283 = ssub.s32 8192, 8192
          %284 = vsyncadd %s278, %s283
          %s285 = smul.addr %s30, 128
          %s286 = smul.addr %s285, 64
          %s287 = scalar_lea.hbm %s3, %s286
          %s288 = sshll.u32 %s281, 4
          %s289 = int_to_ptr.vmem [resolvable:$true] %s288
          %294 = dma.hbm_to_vmem [thread:$0]  %s287, 8192, %s289, %s278, 64, 64, 4
        $region32: #{tpu_custom_call.1} parent=15 // pred_fallthru
          _
        // Predicated region
        $region33: #{tpu_custom_call.1} parent=15 // pred_check
          %p295 = pneg %p161
        $region34: #{tpu_custom_call.1} parent=15 // pred_check_branch
          %297 = sbr.rel (%p295) target = $region36
        $region35: #{tpu_custom_call.1} parent=15 // pred_region
          %s298 = sand.u32 %s23, 1
          %s299 = scalar_lea.sflag [#allocation10], %s298
          %s300 = sand.u32 %s151, 1
          %s301 = scalar_lea.vmem [#allocation11], %s300
          %s303 = ssub.s32 16, 16
          %304 = vsyncadd %s299, %s303
          %s305 = smul.addr %s30, 16
          %s306 = scalar_lea.hbm %s4, %s305
          %s308 = sshll.u32 %s301, 4
          %s309 = int_to_ptr.vmem [resolvable:$true] %s308
          %311 = dma.hbm_to_vmem [thread:$0]  %s306, 16, %s309, %s299
        $region36: #{tpu_custom_call.1} parent=15 // pred_fallthru
          _
      $region16: #{tpu_custom_call.1} parent=5 // pred_fallthru
        _
      %p312 = scmp.le.s32.totalorder 1, %s23
      %p313 = scmp.lt.s32.totalorder %s23, 13
      %p314 = pnand %p312, %p313
      %p315 = pneg %p314
      // Predicated region
      $region37: #{tpu_custom_call.1} parent=5 // pred_check
        _
      $region38: #{tpu_custom_call.1} parent=5 // pred_check_branch
        %317 = sbr.rel (%p314) target = $region40
      $region39: #{tpu_custom_call.1} parent=5 // pred_region
        %s318 = ssub.s32 %s23, 1
        %s319 = sand.u32 %s48, 1
        %s320 = scalar_lea.sflag [#allocation4], %s319
        %s321 = sand.u32 %s48, 1
        %s322 = smul.addr %s321, 16
        %s323 = scalar_lea.vmem [#allocation3], %s322
        // Predicated region
        $region41: #{tpu_custom_call.1} parent=39 // pred_check
          %p324 = pneg %p61
        $region42: #{tpu_custom_call.1} parent=39 // pred_check_branch
          %326 = sbr.rel (%p324) target = $region44
        $region43: #{tpu_custom_call.1} parent=39 // pred_region
          %327 = dma.done %s320, 256
        $region44: #{tpu_custom_call.1} parent=39 // pred_fallthru
          _
        %s328 = sand.u32 %s28, 1
        %s329 = scalar_lea.sflag [#allocation7], %s328
        %s330 = sand.u32 %s76, 1
        %s331 = smul.addr %s330, 2048
        %s332 = scalar_lea.vmem [#allocation6], %s331
        // Predicated region
        $region45: #{tpu_custom_call.1} parent=39 // pred_check
          %p333 = pneg %p89
        $region46: #{tpu_custom_call.1} parent=39 // pred_check_branch
          %335 = sbr.rel (%p333) target = $region48
        $region47: #{tpu_custom_call.1} parent=39 // pred_region
          %336 = dma.done %s329, 32768
        $region48: #{tpu_custom_call.1} parent=39 // pred_fallthru
          _
        %s337 = sand.u32 %s28, 1
        %s338 = scalar_lea.sflag [#allocation7], %s337
        %s339 = sand.u32 %s102, 1
        %s340 = smul.addr %s339, 8
        %s341 = scalar_lea.vmem [#allocation8], %s340
        // Predicated region
        $region49: #{tpu_custom_call.1} parent=39 // pred_check
          %p342 = pneg %p115
        $region50: #{tpu_custom_call.1} parent=39 // pred_check_branch
          %344 = sbr.rel (%p342) target = $region52
        $region51: #{tpu_custom_call.1} parent=39 // pred_region
          %345 = dma.done %s338, 128
        $region52: #{tpu_custom_call.1} parent=39 // pred_fallthru
          _
        %s346 = sand.u32 %s28, 1
        %s347 = scalar_lea.sflag [#allocation10], %s346
        %s348 = sand.u32 %s128, 1
        %s349 = smul.addr %s348, 512
        %s350 = scalar_lea.vmem [#allocation9], %s349
        // Predicated region
        $region53: #{tpu_custom_call.1} parent=39 // pred_check
          %p351 = pneg %p141
        $region54: #{tpu_custom_call.1} parent=39 // pred_check_branch
          %353 = sbr.rel (%p351) target = $region56
        $region55: #{tpu_custom_call.1} parent=39 // pred_region
          %354 = dma.done %s347, 8192
        $region56: #{tpu_custom_call.1} parent=39 // pred_fallthru
          _
        %s355 = sand.u32 %s28, 1
        %s356 = scalar_lea.sflag [#allocation10], %s355
        %s357 = sand.u32 %s154, 1
        %s358 = scalar_lea.vmem [#allocation11], %s357
        // Predicated region
        $region57: #{tpu_custom_call.1} parent=39 // pred_check
          %p359 = pneg %p167
        $region58: #{tpu_custom_call.1} parent=39 // pred_check_branch
          %361 = sbr.rel (%p359) target = $region60
        $region59: #{tpu_custom_call.1} parent=39 // pred_region
          %362 = dma.done %s356, 16
        $region60: #{tpu_custom_call.1} parent=39 // pred_fallthru
          _
        %s363 = sand.u32 %s48, 1
        %s364 = scalar_lea.sflag [#allocation4], %s363
        %s365 = sand.u32 %s48, 1
        %s366 = smul.addr %s365, 16
        %s367 = scalar_lea.vmem [#allocation3], %s366
        %p368 = pneg %p61
        %p369 = pneg %p58
        %s370 = sand.u32 %s28, 1
        %s371 = scalar_lea.sflag [#allocation7], %s370
        %s372 = sand.u32 %s76, 1
        %s373 = smul.addr %s372, 2048
        %s374 = scalar_lea.vmem [#allocation6], %s373
        %p375 = pneg %p89
        %p376 = pneg %p86
        %s377 = sand.u32 %s28, 1
        %s378 = scalar_lea.sflag [#allocation7], %s377
        %s379 = sand.u32 %s102, 1
        %s380 = smul.addr %s379, 8
        %s381 = scalar_lea.vmem [#allocation8], %s380
        %p382 = pneg %p115
        %p383 = pneg %p112
        %s384 = sand.u32 %s28, 1
        %s385 = scalar_lea.sflag [#allocation10], %s384
        %s386 = sand.u32 %s128, 1
        %s387 = smul.addr %s386, 512
        %s388 = scalar_lea.vmem [#allocation9], %s387
        %p389 = pneg %p141
        %p390 = pneg %p138
        %s391 = sand.u32 %s28, 1
        %s392 = scalar_lea.sflag [#allocation10], %s391
        %s393 = sand.u32 %s154, 1
        %s394 = scalar_lea.vmem [#allocation11], %s393
        %p395 = pneg %p167
        %p396 = pneg %p164
        %p397 = pneg %p193
        %p398 = pneg %p190
        %s399 = sand.u32 %s180, 1
        %s400 = scalar_lea.sflag [#allocation5], %s399
        %s401 = sand.u32 %s180, 1
        %s402 = smul.addr %s401, 8
        %s403 = scalar_lea.vmem [#allocation12], %s402
        %s404 = smul.u32 4, %s33
        %s405 = smul.u32 64, %s33
        %p407 = scmp.eq.s32.totalorder %s33, 0
        // Predicated region
        $region61: #{tpu_custom_call.1} parent=39 // pred_check
          %p408 = pneg %p407
        $region62: #{tpu_custom_call.1} parent=39 // pred_check_branch
          %410 = sbr.rel (%p408) target = $region64
        $region63: #{tpu_custom_call.1} parent=39 // pred_region
          %411 = vst [vmem:[#allocation2] sm:$0xff] 0.0
          %412 = vst [vmem:[#allocation2 + $0x8] sm:$0xff] 0.0
          %413 = vst [vmem:[#allocation2 + $0x10] sm:$0xff] 0.0
          %414 = vst [vmem:[#allocation2 + $0x18] sm:$0xff] 0.0
          %415 = vst [vmem:[#allocation2 + $0x20] sm:$0xff] 0.0
          %416 = vst [vmem:[#allocation2 + $0x28] sm:$0xff] 0.0
          %417 = vst [vmem:[#allocation2 + $0x30] sm:$0xff] 0.0
          %418 = vst [vmem:[#allocation2 + $0x38] sm:$0xff] 0.0
        $region64: #{tpu_custom_call.1} parent=39 // pred_fallthru
          _
        %v419 = vld [vmem:[#allocation2] sm:$0xff]
        %v420 = vld [vmem:[#allocation2 + $0x8] sm:$0xff]
        %v421 = vld [vmem:[#allocation2 + $0x10] sm:$0xff]
        %v422 = vld [vmem:[#allocation2 + $0x18] sm:$0xff]
        %v423 = vld [vmem:[#allocation2 + $0x20] sm:$0xff]
        %v424 = vld [vmem:[#allocation2 + $0x28] sm:$0xff]
        %v425 = vld [vmem:[#allocation2 + $0x30] sm:$0xff]
        %v426 = vld [vmem:[#allocation2 + $0x38] sm:$0xff]
        %v427 = vld [vmem:[%s323] sm:$0xff]
        %v428 = vld [vmem:[%s323 + $0x8] sm:$0xff]
        %v429 = vld [vmem:[%s332] sm:$0xff]
        %v430 = vld [vmem:[%s332 + $0x8] sm:$0xff]
        %v431 = vld [vmem:[%s332 + $0x10] sm:$0xff]
        %v432 = vld [vmem:[%s332 + $0x18] sm:$0xff]
        %v433 = vld [vmem:[%s332 + $0x20] sm:$0xff]
        %v434 = vld [vmem:[%s332 + $0x28] sm:$0xff]
        %v435 = vld [vmem:[%s332 + $0x30] sm:$0xff]
        %v436 = vld [vmem:[%s332 + $0x38] sm:$0xff]
        %v437 = vld [vmem:[%s332 + $0x40] sm:$0xff]
        %v438 = vld [vmem:[%s332 + $0x48] sm:$0xff]
        %v439 = vld [vmem:[%s332 + $0x50] sm:$0xff]
        %v440 = vld [vmem:[%s332 + $0x58] sm:$0xff]
        %v441 = vld [vmem:[%s332 + $0x60] sm:$0xff]
        %v442 = vld [vmem:[%s332 + $0x68] sm:$0xff]
        %v443 = vld [vmem:[%s332 + $0x70] sm:$0xff]
        %v444 = vld [vmem:[%s332 + $0x78] sm:$0xff]
        %v445 = vld [vmem:[%s332 + $0x80] sm:$0xff]
        %v446 = vld [vmem:[%s332 + $0x88] sm:$0xff]
        %v447 = vld [vmem:[%s332 + $0x90] sm:$0xff]
        %v448 = vld [vmem:[%s332 + $0x98] sm:$0xff]
        %v449 = vld [vmem:[%s332 + $0xa0] sm:$0xff]
        %v450 = vld [vmem:[%s332 + $0xa8] sm:$0xff]
        %v451 = vld [vmem:[%s332 + $0xb0] sm:$0xff]
        %v452 = vld [vmem:[%s332 + $0xb8] sm:$0xff]
        %v453 = vld [vmem:[%s332 + $0xc0] sm:$0xff]
        %v454 = vld [vmem:[%s332 + $0xc8] sm:$0xff]
        %v455 = vld [vmem:[%s332 + $0xd0] sm:$0xff]
        %v456 = vld [vmem:[%s332 + $0xd8] sm:$0xff]
        %v457 = vld [vmem:[%s332 + $0xe0] sm:$0xff]
        %v458 = vld [vmem:[%s332 + $0xe8] sm:$0xff]
        %v459 = vld [vmem:[%s332 + $0xf0] sm:$0xff]
        %v460 = vld [vmem:[%s332 + $0xf8] sm:$0xff]
        %v461 = vld [vmem:[%s332 + $0x100] sm:$0xff]
        %v462 = vld [vmem:[%s332 + $0x108] sm:$0xff]
        %v463 = vld [vmem:[%s332 + $0x110] sm:$0xff]
        %v464 = vld [vmem:[%s332 + $0x118] sm:$0xff]
        %v465 = vld [vmem:[%s332 + $0x120] sm:$0xff]
        %v466 = vld [vmem:[%s332 + $0x128] sm:$0xff]
        %v467 = vld [vmem:[%s332 + $0x130] sm:$0xff]
        %v468 = vld [vmem:[%s332 + $0x138] sm:$0xff]
        %v469 = vld [vmem:[%s332 + $0x140] sm:$0xff]
        %v470 = vld [vmem:[%s332 + $0x148] sm:$0xff]
        %v471 = vld [vmem:[%s332 + $0x150] sm:$0xff]
        %v472 = vld [vmem:[%s332 + $0x158] sm:$0xff]
        %v473 = vld [vmem:[%s332 + $0x160] sm:$0xff]
        %v474 = vld [vmem:[%s332 + $0x168] sm:$0xff]
        %v475 = vld [vmem:[%s332 + $0x170] sm:$0xff]
        %v476 = vld [vmem:[%s332 + $0x178] sm:$0xff]
        %v477 = vld [vmem:[%s332 + $0x180] sm:$0xff]
        %v478 = vld [vmem:[%s332 + $0x188] sm:$0xff]
        %v479 = vld [vmem:[%s332 + $0x190] sm:$0xff]
        %v480 = vld [vmem:[%s332 + $0x198] sm:$0xff]
        %v481 = vld [vmem:[%s332 + $0x1a0] sm:$0xff]
        %v482 = vld [vmem:[%s332 + $0x1a8] sm:$0xff]
        %v483 = vld [vmem:[%s332 + $0x1b0] sm:$0xff]
        %v484 = vld [vmem:[%s332 + $0x1b8] sm:$0xff]
        %v485 = vld [vmem:[%s332 + $0x1c0] sm:$0xff]
        %v486 = vld [vmem:[%s332 + $0x1c8] sm:$0xff]
        %v487 = vld [vmem:[%s332 + $0x1d0] sm:$0xff]
        %v488 = vld [vmem:[%s332 + $0x1d8] sm:$0xff]
        %v489 = vld [vmem:[%s332 + $0x1e0] sm:$0xff]
        %v490 = vld [vmem:[%s332 + $0x1e8] sm:$0xff]
        %v491 = vld [vmem:[%s332 + $0x1f0] sm:$0xff]
        %v492 = vld [vmem:[%s332 + $0x1f8] sm:$0xff]
        %v493 = vld [vmem:[%s332 + $0x200] sm:$0xff]
        %v494 = vld [vmem:[%s332 + $0x208] sm:$0xff]
        %v495 = vld [vmem:[%s332 + $0x210] sm:$0xff]
        %v496 = vld [vmem:[%s332 + $0x218] sm:$0xff]
        %v497 = vld [vmem:[%s332 + $0x220] sm:$0xff]
        %v498 = vld [vmem:[%s332 + $0x228] sm:$0xff]
        %v499 = vld [vmem:[%s332 + $0x230] sm:$0xff]
        %v500 = vld [vmem:[%s332 + $0x238] sm:$0xff]
        %v501 = vld [vmem:[%s332 + $0x240] sm:$0xff]
        %v502 = vld [vmem:[%s332 + $0x248] sm:$0xff]
        %v503 = vld [vmem:[%s332 + $0x250] sm:$0xff]
        %v504 = vld [vmem:[%s332 + $0x258] sm:$0xff]
        %v505 = vld [vmem:[%s332 + $0x260] sm:$0xff]
        %v506 = vld [vmem:[%s332 + $0x268] sm:$0xff]
        %v507 = vld [vmem:[%s332 + $0x270] sm:$0xff]
        %v508 = vld [vmem:[%s332 + $0x278] sm:$0xff]
        %v509 = vld [vmem:[%s332 + $0x280] sm:$0xff]
        %v510 = vld [vmem:[%s332 + $0x288] sm:$0xff]
        %v511 = vld [vmem:[%s332 + $0x290] sm:$0xff]
        %v512 = vld [vmem:[%s332 + $0x298] sm:$0xff]
        %v513 = vld [vmem:[%s332 + $0x2a0] sm:$0xff]
        %v514 = vld [vmem:[%s332 + $0x2a8] sm:$0xff]
        %v515 = vld [vmem:[%s332 + $0x2b0] sm:$0xff]
        %v516 = vld [vmem:[%s332 + $0x2b8] sm:$0xff]
        %v517 = vld [vmem:[%s332 + $0x2c0] sm:$0xff]
        %v518 = vld [vmem:[%s332 + $0x2c8] sm:$0xff]
        %v519 = vld [vmem:[%s332 + $0x2d0] sm:$0xff]
        %v520 = vld [vmem:[%s332 + $0x2d8] sm:$0xff]
        %v521 = vld [vmem:[%s332 + $0x2e0] sm:$0xff]
        %v522 = vld [vmem:[%s332 + $0x2e8] sm:$0xff]
        %v523 = vld [vmem:[%s332 + $0x2f0] sm:$0xff]
        %v524 = vld [vmem:[%s332 + $0x2f8] sm:$0xff]
        %v525 = vld [vmem:[%s332 + $0x300] sm:$0xff]
        %v526 = vld [vmem:[%s332 + $0x308] sm:$0xff]
        %v527 = vld [vmem:[%s332 + $0x310] sm:$0xff]
        %v528 = vld [vmem:[%s332 + $0x318] sm:$0xff]
        %v529 = vld [vmem:[%s332 + $0x320] sm:$0xff]
        %v530 = vld [vmem:[%s332 + $0x328] sm:$0xff]
        %v531 = vld [vmem:[%s332 + $0x330] sm:$0xff]
        %v532 = vld [vmem:[%s332 + $0x338] sm:$0xff]
        %v533 = vld [vmem:[%s332 + $0x340] sm:$0xff]
        %v534 = vld [vmem:[%s332 + $0x348] sm:$0xff]
        %v535 = vld [vmem:[%s332 + $0x350] sm:$0xff]
        %v536 = vld [vmem:[%s332 + $0x358] sm:$0xff]
        %v537 = vld [vmem:[%s332 + $0x360] sm:$0xff]
        %v538 = vld [vmem:[%s332 + $0x368] sm:$0xff]
        %v539 = vld [vmem:[%s332 + $0x370] sm:$0xff]
        %v540 = vld [vmem:[%s332 + $0x378] sm:$0xff]
        %v541 = vld [vmem:[%s332 + $0x380] sm:$0xff]
        %v542 = vld [vmem:[%s332 + $0x388] sm:$0xff]
        %v543 = vld [vmem:[%s332 + $0x390] sm:$0xff]
        %v544 = vld [vmem:[%s332 + $0x398] sm:$0xff]
        %v545 = vld [vmem:[%s332 + $0x3a0] sm:$0xff]
        %v546 = vld [vmem:[%s332 + $0x3a8] sm:$0xff]
        %v547 = vld [vmem:[%s332 + $0x3b0] sm:$0xff]
        %v548 = vld [vmem:[%s332 + $0x3b8] sm:$0xff]
        %v549 = vld [vmem:[%s332 + $0x3c0] sm:$0xff]
        %v550 = vld [vmem:[%s332 + $0x3c8] sm:$0xff]
        %v551 = vld [vmem:[%s332 + $0x3d0] sm:$0xff]
        %v552 = vld [vmem:[%s332 + $0x3d8] sm:$0xff]
        %v553 = vld [vmem:[%s332 + $0x3e0] sm:$0xff]
        %v554 = vld [vmem:[%s332 + $0x3e8] sm:$0xff]
        %v555 = vld [vmem:[%s332 + $0x3f0] sm:$0xff]
        %v556 = vld [vmem:[%s332 + $0x3f8] sm:$0xff]
        %v557 = vld [vmem:[%s332 + $0x400] sm:$0xff]
        %v558 = vld [vmem:[%s332 + $0x408] sm:$0xff]
        %v559 = vld [vmem:[%s332 + $0x410] sm:$0xff]
        %v560 = vld [vmem:[%s332 + $0x418] sm:$0xff]
        %v561 = vld [vmem:[%s332 + $0x420] sm:$0xff]
        %v562 = vld [vmem:[%s332 + $0x428] sm:$0xff]
        %v563 = vld [vmem:[%s332 + $0x430] sm:$0xff]
        %v564 = vld [vmem:[%s332 + $0x438] sm:$0xff]
        %v565 = vld [vmem:[%s332 + $0x440] sm:$0xff]
        %v566 = vld [vmem:[%s332 + $0x448] sm:$0xff]
        %v567 = vld [vmem:[%s332 + $0x450] sm:$0xff]
        %v568 = vld [vmem:[%s332 + $0x458] sm:$0xff]
        %v569 = vld [vmem:[%s332 + $0x460] sm:$0xff]
        %v570 = vld [vmem:[%s332 + $0x468] sm:$0xff]
        %v571 = vld [vmem:[%s332 + $0x470] sm:$0xff]
        %v572 = vld [vmem:[%s332 + $0x478] sm:$0xff]
        %v573 = vld [vmem:[%s332 + $0x480] sm:$0xff]
        %v574 = vld [vmem:[%s332 + $0x488] sm:$0xff]
        %v575 = vld [vmem:[%s332 + $0x490] sm:$0xff]
        %v576 = vld [vmem:[%s332 + $0x498] sm:$0xff]
        %v577 = vld [vmem:[%s332 + $0x4a0] sm:$0xff]
        %v578 = vld [vmem:[%s332 + $0x4a8] sm:$0xff]
        %v579 = vld [vmem:[%s332 + $0x4b0] sm:$0xff]
        %v580 = vld [vmem:[%s332 + $0x4b8] sm:$0xff]
        %v581 = vld [vmem:[%s332 + $0x4c0] sm:$0xff]
        %v582 = vld [vmem:[%s332 + $0x4c8] sm:$0xff]
        %v583 = vld [vmem:[%s332 + $0x4d0] sm:$0xff]
        %v584 = vld [vmem:[%s332 + $0x4d8] sm:$0xff]
        %v585 = vld [vmem:[%s332 + $0x4e0] sm:$0xff]
        %v586 = vld [vmem:[%s332 + $0x4e8] sm:$0xff]
        %v587 = vld [vmem:[%s332 + $0x4f0] sm:$0xff]
        %v588 = vld [vmem:[%s332 + $0x4f8] sm:$0xff]
        %v589 = vld [vmem:[%s332 + $0x500] sm:$0xff]
        %v590 = vld [vmem:[%s332 + $0x508] sm:$0xff]
        %v591 = vld [vmem:[%s332 + $0x510] sm:$0xff]
        %v592 = vld [vmem:[%s332 + $0x518] sm:$0xff]
        %v593 = vld [vmem:[%s332 + $0x520] sm:$0xff]
        %v594 = vld [vmem:[%s332 + $0x528] sm:$0xff]
        %v595 = vld [vmem:[%s332 + $0x530] sm:$0xff]
        %v596 = vld [vmem:[%s332 + $0x538] sm:$0xff]
        %v597 = vld [vmem:[%s332 + $0x540] sm:$0xff]
        %v598 = vld [vmem:[%s332 + $0x548] sm:$0xff]
        %v599 = vld [vmem:[%s332 + $0x550] sm:$0xff]
        %v600 = vld [vmem:[%s332 + $0x558] sm:$0xff]
        %v601 = vld [vmem:[%s332 + $0x560] sm:$0xff]
        %v602 = vld [vmem:[%s332 + $0x568] sm:$0xff]
        %v603 = vld [vmem:[%s332 + $0x570] sm:$0xff]
        %v604 = vld [vmem:[%s332 + $0x578] sm:$0xff]
        %v605 = vld [vmem:[%s332 + $0x580] sm:$0xff]
        %v606 = vld [vmem:[%s332 + $0x588] sm:$0xff]
        %v607 = vld [vmem:[%s332 + $0x590] sm:$0xff]
        %v608 = vld [vmem:[%s332 + $0x598] sm:$0xff]
        %v609 = vld [vmem:[%s332 + $0x5a0] sm:$0xff]
        %v610 = vld [vmem:[%s332 + $0x5a8] sm:$0xff]
        %v611 = vld [vmem:[%s332 + $0x5b0] sm:$0xff]
        %v612 = vld [vmem:[%s332 + $0x5b8] sm:$0xff]
        %v613 = vld [vmem:[%s332 + $0x5c0] sm:$0xff]
        %v614 = vld [vmem:[%s332 + $0x5c8] sm:$0xff]
        %v615 = vld [vmem:[%s332 + $0x5d0] sm:$0xff]
        %v616 = vld [vmem:[%s332 + $0x5d8] sm:$0xff]
        %v617 = vld [vmem:[%s332 + $0x5e0] sm:$0xff]
        %v618 = vld [vmem:[%s332 + $0x5e8] sm:$0xff]
        %v619 = vld [vmem:[%s332 + $0x5f0] sm:$0xff]
        %v620 = vld [vmem:[%s332 + $0x5f8] sm:$0xff]
        %v621 = vld [vmem:[%s332 + $0x600] sm:$0xff]
        %v622 = vld [vmem:[%s332 + $0x608] sm:$0xff]
        %v623 = vld [vmem:[%s332 + $0x610] sm:$0xff]
        %v624 = vld [vmem:[%s332 + $0x618] sm:$0xff]
        %v625 = vld [vmem:[%s332 + $0x620] sm:$0xff]
        %v626 = vld [vmem:[%s332 + $0x628] sm:$0xff]
        %v627 = vld [vmem:[%s332 + $0x630] sm:$0xff]
        %v628 = vld [vmem:[%s332 + $0x638] sm:$0xff]
        %v629 = vld [vmem:[%s332 + $0x640] sm:$0xff]
        %v630 = vld [vmem:[%s332 + $0x648] sm:$0xff]
        %v631 = vld [vmem:[%s332 + $0x650] sm:$0xff]
        %v632 = vld [vmem:[%s332 + $0x658] sm:$0xff]
        %v633 = vld [vmem:[%s332 + $0x660] sm:$0xff]
        %v634 = vld [vmem:[%s332 + $0x668] sm:$0xff]
        %v635 = vld [vmem:[%s332 + $0x670] sm:$0xff]
        %v636 = vld [vmem:[%s332 + $0x678] sm:$0xff]
        %v637 = vld [vmem:[%s332 + $0x680] sm:$0xff]
        %v638 = vld [vmem:[%s332 + $0x688] sm:$0xff]
        %v639 = vld [vmem:[%s332 + $0x690] sm:$0xff]
        %v640 = vld [vmem:[%s332 + $0x698] sm:$0xff]
        %v641 = vld [vmem:[%s332 + $0x6a0] sm:$0xff]
        %v642 = vld [vmem:[%s332 + $0x6a8] sm:$0xff]
        %v643 = vld [vmem:[%s332 + $0x6b0] sm:$0xff]
        %v644 = vld [vmem:[%s332 + $0x6b8] sm:$0xff]
        %v645 = vld [vmem:[%s332 + $0x6c0] sm:$0xff]
        %v646 = vld [vmem:[%s332 + $0x6c8] sm:$0xff]
        %v647 = vld [vmem:[%s332 + $0x6d0] sm:$0xff]
        %v648 = vld [vmem:[%s332 + $0x6d8] sm:$0xff]
        %v649 = vld [vmem:[%s332 + $0x6e0] sm:$0xff]
        %v650 = vld [vmem:[%s332 + $0x6e8] sm:$0xff]
        %v651 = vld [vmem:[%s332 + $0x6f0] sm:$0xff]
        %v652 = vld [vmem:[%s332 + $0x6f8] sm:$0xff]
        %v653 = vld [vmem:[%s332 + $0x700] sm:$0xff]
        %v654 = vld [vmem:[%s332 + $0x708] sm:$0xff]
        %v655 = vld [vmem:[%s332 + $0x710] sm:$0xff]
        %v656 = vld [vmem:[%s332 + $0x718] sm:$0xff]
        %v657 = vld [vmem:[%s332 + $0x720] sm:$0xff]
        %v658 = vld [vmem:[%s332 + $0x728] sm:$0xff]
        %v659 = vld [vmem:[%s332 + $0x730] sm:$0xff]
        %v660 = vld [vmem:[%s332 + $0x738] sm:$0xff]
        %v661 = vld [vmem:[%s332 + $0x740] sm:$0xff]
        %v662 = vld [vmem:[%s332 + $0x748] sm:$0xff]
        %v663 = vld [vmem:[%s332 + $0x750] sm:$0xff]
        %v664 = vld [vmem:[%s332 + $0x758] sm:$0xff]
        %v665 = vld [vmem:[%s332 + $0x760] sm:$0xff]
        %v666 = vld [vmem:[%s332 + $0x768] sm:$0xff]
        %v667 = vld [vmem:[%s332 + $0x770] sm:$0xff]
        %v668 = vld [vmem:[%s332 + $0x778] sm:$0xff]
        %v669 = vld [vmem:[%s332 + $0x780] sm:$0xff]
        %v670 = vld [vmem:[%s332 + $0x788] sm:$0xff]
        %v671 = vld [vmem:[%s332 + $0x790] sm:$0xff]
        %v672 = vld [vmem:[%s332 + $0x798] sm:$0xff]
        %v673 = vld [vmem:[%s332 + $0x7a0] sm:$0xff]
        %v674 = vld [vmem:[%s332 + $0x7a8] sm:$0xff]
        %v675 = vld [vmem:[%s332 + $0x7b0] sm:$0xff]
        %v676 = vld [vmem:[%s332 + $0x7b8] sm:$0xff]
        %v677 = vld [vmem:[%s332 + $0x7c0] sm:$0xff]
        %v678 = vld [vmem:[%s332 + $0x7c8] sm:$0xff]
        %v679 = vld [vmem:[%s332 + $0x7d0] sm:$0xff]
        %v680 = vld [vmem:[%s332 + $0x7d8] sm:$0xff]
        %v681 = vld [vmem:[%s332 + $0x7e0] sm:$0xff]
        %v682 = vld [vmem:[%s332 + $0x7e8] sm:$0xff]
        %v683 = vld [vmem:[%s332 + $0x7f0] sm:$0xff]
        %v684 = vld [vmem:[%s332 + $0x7f8] sm:$0xff]
        %v687 = vunpack.c.l.b16 %v427
        %v688 = vunpack.c.h.b16 %v427
        %v689 = vunpack.c.l.b16 %v428
        %v690 = vunpack.c.h.b16 %v428
        %v691 = vpack.c.b16 %v687, %v687
        %v692 = vpack.c.b16 %v688, %v688
        %v693 = vpack.c.b16 %v689, %v689
        %v694 = vpack.c.b16 %v690, %v690
        %v955 = vunpack.c.l.b16 %v429
        %v956 = vunpack.c.h.b16 %v429
        %v957 = vunpack.c.l.b16 %v430
        %v958 = vunpack.c.h.b16 %v430
        %v959 = vunpack.c.l.b16 %v431
        %v960 = vunpack.c.h.b16 %v431
        %v961 = vunpack.c.l.b16 %v432
        %v962 = vunpack.c.h.b16 %v432
        %v963 = vunpack.c.l.b16 %v433
        %v964 = vunpack.c.h.b16 %v433
        %v965 = vunpack.c.l.b16 %v434
        %v966 = vunpack.c.h.b16 %v434
        %v967 = vunpack.c.l.b16 %v435
        %v968 = vunpack.c.h.b16 %v435
        %v969 = vunpack.c.l.b16 %v436
        %v970 = vunpack.c.h.b16 %v436
        %v971 = vunpack.c.l.b16 %v437
        %v972 = vunpack.c.h.b16 %v437
        %v973 = vunpack.c.l.b16 %v438
        %v974 = vunpack.c.h.b16 %v438
        %v975 = vunpack.c.l.b16 %v439
        %v976 = vunpack.c.h.b16 %v439
        %v977 = vunpack.c.l.b16 %v440
        %v978 = vunpack.c.h.b16 %v440
        %v979 = vunpack.c.l.b16 %v441
        %v980 = vunpack.c.h.b16 %v441
        %v981 = vunpack.c.l.b16 %v442
        %v982 = vunpack.c.h.b16 %v442
        %v983 = vunpack.c.l.b16 %v443
        %v984 = vunpack.c.h.b16 %v443
        %v985 = vunpack.c.l.b16 %v444
        %v986 = vunpack.c.h.b16 %v444
        %v987 = vunpack.c.l.b16 %v445
        %v988 = vunpack.c.h.b16 %v445
        %v989 = vunpack.c.l.b16 %v446
        %v990 = vunpack.c.h.b16 %v446
        %v991 = vunpack.c.l.b16 %v447
        %v992 = vunpack.c.h.b16 %v447
        %v993 = vunpack.c.l.b16 %v448
        %v994 = vunpack.c.h.b16 %v448
        %v995 = vunpack.c.l.b16 %v449
        %v996 = vunpack.c.h.b16 %v449
        %v997 = vunpack.c.l.b16 %v450
        %v998 = vunpack.c.h.b16 %v450
        %v999 = vunpack.c.l.b16 %v451
        %v1000 = vunpack.c.h.b16 %v451
        %v1001 = vunpack.c.l.b16 %v452
        %v1002 = vunpack.c.h.b16 %v452
        %v1003 = vunpack.c.l.b16 %v453
        %v1004 = vunpack.c.h.b16 %v453
        %v1005 = vunpack.c.l.b16 %v454
        %v1006 = vunpack.c.h.b16 %v454
        %v1007 = vunpack.c.l.b16 %v455
        %v1008 = vunpack.c.h.b16 %v455
        %v1009 = vunpack.c.l.b16 %v456
        %v1010 = vunpack.c.h.b16 %v456
        %v1011 = vunpack.c.l.b16 %v457
        %v1012 = vunpack.c.h.b16 %v457
        %v1013 = vunpack.c.l.b16 %v458
        %v1014 = vunpack.c.h.b16 %v458
        %v1015 = vunpack.c.l.b16 %v459
        %v1016 = vunpack.c.h.b16 %v459
        %v1017 = vunpack.c.l.b16 %v460
        %v1018 = vunpack.c.h.b16 %v460
        %v1019 = vunpack.c.l.b16 %v461
        %v1020 = vunpack.c.h.b16 %v461
        %v1021 = vunpack.c.l.b16 %v462
        %v1022 = vunpack.c.h.b16 %v462
        %v1023 = vunpack.c.l.b16 %v463
        %v1024 = vunpack.c.h.b16 %v463
        %v1025 = vunpack.c.l.b16 %v464
        %v1026 = vunpack.c.h.b16 %v464
        %v1027 = vunpack.c.l.b16 %v465
        %v1028 = vunpack.c.h.b16 %v465
        %v1029 = vunpack.c.l.b16 %v466
        %v1030 = vunpack.c.h.b16 %v466
        %v1031 = vunpack.c.l.b16 %v467
        %v1032 = vunpack.c.h.b16 %v467
        %v1033 = vunpack.c.l.b16 %v468
        %v1034 = vunpack.c.h.b16 %v468
        %v1035 = vunpack.c.l.b16 %v469
        %v1036 = vunpack.c.h.b16 %v469
        %v1037 = vunpack.c.l.b16 %v470
        %v1038 = vunpack.c.h.b16 %v470
        %v1039 = vunpack.c.l.b16 %v471
        %v1040 = vunpack.c.h.b16 %v471
        %v1041 = vunpack.c.l.b16 %v472
        %v1042 = vunpack.c.h.b16 %v472
        %v1043 = vunpack.c.l.b16 %v473
        %v1044 = vunpack.c.h.b16 %v473
        %v1045 = vunpack.c.l.b16 %v474
        %v1046 = vunpack.c.h.b16 %v474
        %v1047 = vunpack.c.l.b16 %v475
        %v1048 = vunpack.c.h.b16 %v475
        %v1049 = vunpack.c.l.b16 %v476
        %v1050 = vunpack.c.h.b16 %v476
        %v1051 = vunpack.c.l.b16 %v477
        %v1052 = vunpack.c.h.b16 %v477
        %v1053 = vunpack.c.l.b16 %v478
        %v1054 = vunpack.c.h.b16 %v478
        %v1055 = vunpack.c.l.b16 %v479
        %v1056 = vunpack.c.h.b16 %v479
        %v1057 = vunpack.c.l.b16 %v480
        %v1058 = vunpack.c.h.b16 %v480
        %v1059 = vunpack.c.l.b16 %v481
        %v1060 = vunpack.c.h.b16 %v481
        %v1061 = vunpack.c.l.b16 %v482
        %v1062 = vunpack.c.h.b16 %v482
        %v1063 = vunpack.c.l.b16 %v483
        %v1064 = vunpack.c.h.b16 %v483
        %v1065 = vunpack.c.l.b16 %v484
        %v1066 = vunpack.c.h.b16 %v484
        %v1067 = vunpack.c.l.b16 %v485
        %v1068 = vunpack.c.h.b16 %v485
        %v1069 = vunpack.c.l.b16 %v486
        %v1070 = vunpack.c.h.b16 %v486
        %v1071 = vunpack.c.l.b16 %v487
        %v1072 = vunpack.c.h.b16 %v487
        %v1073 = vunpack.c.l.b16 %v488
        %v1074 = vunpack.c.h.b16 %v488
        %v1075 = vunpack.c.l.b16 %v489
        %v1076 = vunpack.c.h.b16 %v489
        %v1077 = vunpack.c.l.b16 %v490
        %v1078 = vunpack.c.h.b16 %v490
        %v1079 = vunpack.c.l.b16 %v491
        %v1080 = vunpack.c.h.b16 %v491
        %v1081 = vunpack.c.l.b16 %v492
        %v1082 = vunpack.c.h.b16 %v492
        %v1083 = vunpack.c.l.b16 %v493
        %v1084 = vunpack.c.h.b16 %v493
        %v1085 = vunpack.c.l.b16 %v494
        %v1086 = vunpack.c.h.b16 %v494
        %v1087 = vunpack.c.l.b16 %v495
        %v1088 = vunpack.c.h.b16 %v495
        %v1089 = vunpack.c.l.b16 %v496
        %v1090 = vunpack.c.h.b16 %v496
        %v1091 = vunpack.c.l.b16 %v497
        %v1092 = vunpack.c.h.b16 %v497
        %v1093 = vunpack.c.l.b16 %v498
        %v1094 = vunpack.c.h.b16 %v498
        %v1095 = vunpack.c.l.b16 %v499
        %v1096 = vunpack.c.h.b16 %v499
        %v1097 = vunpack.c.l.b16 %v500
        %v1098 = vunpack.c.h.b16 %v500
        %v1099 = vunpack.c.l.b16 %v501
        %v1100 = vunpack.c.h.b16 %v501
        %v1101 = vunpack.c.l.b16 %v502
        %v1102 = vunpack.c.h.b16 %v502
        %v1103 = vunpack.c.l.b16 %v503
        %v1104 = vunpack.c.h.b16 %v503
        %v1105 = vunpack.c.l.b16 %v504
        %v1106 = vunpack.c.h.b16 %v504
        %v1107 = vunpack.c.l.b16 %v505
        %v1108 = vunpack.c.h.b16 %v505
        %v1109 = vunpack.c.l.b16 %v506
        %v1110 = vunpack.c.h.b16 %v506
        %v1111 = vunpack.c.l.b16 %v507
        %v1112 = vunpack.c.h.b16 %v507
        %v1113 = vunpack.c.l.b16 %v508
        %v1114 = vunpack.c.h.b16 %v508
        %v1115 = vunpack.c.l.b16 %v509
        %v1116 = vunpack.c.h.b16 %v509
        %v1117 = vunpack.c.l.b16 %v510
        %v1118 = vunpack.c.h.b16 %v510
        %v1119 = vunpack.c.l.b16 %v511
        %v1120 = vunpack.c.h.b16 %v511
        %v1121 = vunpack.c.l.b16 %v512
        %v1122 = vunpack.c.h.b16 %v512
        %v1123 = vunpack.c.l.b16 %v513
        %v1124 = vunpack.c.h.b16 %v513
        %v1125 = vunpack.c.l.b16 %v514
        %v1126 = vunpack.c.h.b16 %v514
        %v1127 = vunpack.c.l.b16 %v515
        %v1128 = vunpack.c.h.b16 %v515
        %v1129 = vunpack.c.l.b16 %v516
        %v1130 = vunpack.c.h.b16 %v516
        %v1131 = vunpack.c.l.b16 %v517
        %v1132 = vunpack.c.h.b16 %v517
        %v1133 = vunpack.c.l.b16 %v518
        %v1134 = vunpack.c.h.b16 %v518
        %v1135 = vunpack.c.l.b16 %v519
        %v1136 = vunpack.c.h.b16 %v519
        %v1137 = vunpack.c.l.b16 %v520
        %v1138 = vunpack.c.h.b16 %v520
        %v1139 = vunpack.c.l.b16 %v521
        %v1140 = vunpack.c.h.b16 %v521
        %v1141 = vunpack.c.l.b16 %v522
        %v1142 = vunpack.c.h.b16 %v522
        %v1143 = vunpack.c.l.b16 %v523
        %v1144 = vunpack.c.h.b16 %v523
        %v1145 = vunpack.c.l.b16 %v524
        %v1146 = vunpack.c.h.b16 %v524
        %v1147 = vunpack.c.l.b16 %v525
        %v1148 = vunpack.c.h.b16 %v525
        %v1149 = vunpack.c.l.b16 %v526
        %v1150 = vunpack.c.h.b16 %v526
        %v1151 = vunpack.c.l.b16 %v527
        %v1152 = vunpack.c.h.b16 %v527
        %v1153 = vunpack.c.l.b16 %v528
        %v1154 = vunpack.c.h.b16 %v528
        %v1155 = vunpack.c.l.b16 %v529
        %v1156 = vunpack.c.h.b16 %v529
        %v1157 = vunpack.c.l.b16 %v530
        %v1158 = vunpack.c.h.b16 %v530
        %v1159 = vunpack.c.l.b16 %v531
        %v1160 = vunpack.c.h.b16 %v531
        %v1161 = vunpack.c.l.b16 %v532
        %v1162 = vunpack.c.h.b16 %v532
        %v1163 = vunpack.c.l.b16 %v533
        %v1164 = vunpack.c.h.b16 %v533
        %v1165 = vunpack.c.l.b16 %v534
        %v1166 = vunpack.c.h.b16 %v534
        %v1167 = vunpack.c.l.b16 %v535
        %v1168 = vunpack.c.h.b16 %v535
        %v1169 = vunpack.c.l.b16 %v536
        %v1170 = vunpack.c.h.b16 %v536
        %v1171 = vunpack.c.l.b16 %v537
        %v1172 = vunpack.c.h.b16 %v537
        %v1173 = vunpack.c.l.b16 %v538
        %v1174 = vunpack.c.h.b16 %v538
        %v1175 = vunpack.c.l.b16 %v539
        %v1176 = vunpack.c.h.b16 %v539
        %v1177 = vunpack.c.l.b16 %v540
        %v1178 = vunpack.c.h.b16 %v540
        %v1179 = vunpack.c.l.b16 %v541
        %v1180 = vunpack.c.h.b16 %v541
        %v1181 = vunpack.c.l.b16 %v542
        %v1182 = vunpack.c.h.b16 %v542
        %v1183 = vunpack.c.l.b16 %v543
        %v1184 = vunpack.c.h.b16 %v543
        %v1185 = vunpack.c.l.b16 %v544
        %v1186 = vunpack.c.h.b16 %v544
        %v1187 = vunpack.c.l.b16 %v545
        %v1188 = vunpack.c.h.b16 %v545
        %v1189 = vunpack.c.l.b16 %v546
        %v1190 = vunpack.c.h.b16 %v546
        %v1191 = vunpack.c.l.b16 %v547
        %v1192 = vunpack.c.h.b16 %v547
        %v1193 = vunpack.c.l.b16 %v548
        %v1194 = vunpack.c.h.b16 %v548
        %v1195 = vunpack.c.l.b16 %v549
        %v1196 = vunpack.c.h.b16 %v549
        %v1197 = vunpack.c.l.b16 %v550
        %v1198 = vunpack.c.h.b16 %v550
        %v1199 = vunpack.c.l.b16 %v551
        %v1200 = vunpack.c.h.b16 %v551
        %v1201 = vunpack.c.l.b16 %v552
        %v1202 = vunpack.c.h.b16 %v552
        %v1203 = vunpack.c.l.b16 %v553
        %v1204 = vunpack.c.h.b16 %v553
        %v1205 = vunpack.c.l.b16 %v554
        %v1206 = vunpack.c.h.b16 %v554
        %v1207 = vunpack.c.l.b16 %v555
        %v1208 = vunpack.c.h.b16 %v555
        %v1209 = vunpack.c.l.b16 %v556
        %v1210 = vunpack.c.h.b16 %v556
        %v1211 = vunpack.c.l.b16 %v557
        %v1212 = vunpack.c.h.b16 %v557
        %v1213 = vunpack.c.l.b16 %v558
        %v1214 = vunpack.c.h.b16 %v558
        %v1215 = vunpack.c.l.b16 %v559
        %v1216 = vunpack.c.h.b16 %v559
        %v1217 = vunpack.c.l.b16 %v560
        %v1218 = vunpack.c.h.b16 %v560
        %v1219 = vunpack.c.l.b16 %v561
        %v1220 = vunpack.c.h.b16 %v561
        %v1221 = vunpack.c.l.b16 %v562
        %v1222 = vunpack.c.h.b16 %v562
        %v1223 = vunpack.c.l.b16 %v563
        %v1224 = vunpack.c.h.b16 %v563
        %v1225 = vunpack.c.l.b16 %v564
        %v1226 = vunpack.c.h.b16 %v564
        %v1227 = vunpack.c.l.b16 %v565
        %v1228 = vunpack.c.h.b16 %v565
        %v1229 = vunpack.c.l.b16 %v566
        %v1230 = vunpack.c.h.b16 %v566
        %v1231 = vunpack.c.l.b16 %v567
        %v1232 = vunpack.c.h.b16 %v567
        %v1233 = vunpack.c.l.b16 %v568
        %v1234 = vunpack.c.h.b16 %v568
        %v1235 = vunpack.c.l.b16 %v569
        %v1236 = vunpack.c.h.b16 %v569
        %v1237 = vunpack.c.l.b16 %v570
        %v1238 = vunpack.c.h.b16 %v570
        %v1239 = vunpack.c.l.b16 %v571
        %v1240 = vunpack.c.h.b16 %v571
        %v1241 = vunpack.c.l.b16 %v572
        %v1242 = vunpack.c.h.b16 %v572
        %v1243 = vunpack.c.l.b16 %v573
        %v1244 = vunpack.c.h.b16 %v573
        %v1245 = vunpack.c.l.b16 %v574
        %v1246 = vunpack.c.h.b16 %v574
        %v1247 = vunpack.c.l.b16 %v575
        %v1248 = vunpack.c.h.b16 %v575
        %v1249 = vunpack.c.l.b16 %v576
        %v1250 = vunpack.c.h.b16 %v576
        %v1251 = vunpack.c.l.b16 %v577
        %v1252 = vunpack.c.h.b16 %v577
        %v1253 = vunpack.c.l.b16 %v578
        %v1254 = vunpack.c.h.b16 %v578
        %v1255 = vunpack.c.l.b16 %v579
        %v1256 = vunpack.c.h.b16 %v579
        %v1257 = vunpack.c.l.b16 %v580
        %v1258 = vunpack.c.h.b16 %v580
        %v1259 = vunpack.c.l.b16 %v581
        %v1260 = vunpack.c.h.b16 %v581
        %v1261 = vunpack.c.l.b16 %v582
        %v1262 = vunpack.c.h.b16 %v582
        %v1263 = vunpack.c.l.b16 %v583
        %v1264 = vunpack.c.h.b16 %v583
        %v1265 = vunpack.c.l.b16 %v584
        %v1266 = vunpack.c.h.b16 %v584
        %v1267 = vunpack.c.l.b16 %v585
        %v1268 = vunpack.c.h.b16 %v585
        %v1269 = vunpack.c.l.b16 %v586
        %v1270 = vunpack.c.h.b16 %v586
        %v1271 = vunpack.c.l.b16 %v587
        %v1272 = vunpack.c.h.b16 %v587
        %v1273 = vunpack.c.l.b16 %v588
        %v1274 = vunpack.c.h.b16 %v588
        %v1275 = vunpack.c.l.b16 %v589
        %v1276 = vunpack.c.h.b16 %v589
        %v1277 = vunpack.c.l.b16 %v590
        %v1278 = vunpack.c.h.b16 %v590
        %v1279 = vunpack.c.l.b16 %v591
        %v1280 = vunpack.c.h.b16 %v591
        %v1281 = vunpack.c.l.b16 %v592
        %v1282 = vunpack.c.h.b16 %v592
        %v1283 = vunpack.c.l.b16 %v593
        %v1284 = vunpack.c.h.b16 %v593
        %v1285 = vunpack.c.l.b16 %v594
        %v1286 = vunpack.c.h.b16 %v594
        %v1287 = vunpack.c.l.b16 %v595
        %v1288 = vunpack.c.h.b16 %v595
        %v1289 = vunpack.c.l.b16 %v596
        %v1290 = vunpack.c.h.b16 %v596
        %v1291 = vunpack.c.l.b16 %v597
        %v1292 = vunpack.c.h.b16 %v597
        %v1293 = vunpack.c.l.b16 %v598
        %v1294 = vunpack.c.h.b16 %v598
        %v1295 = vunpack.c.l.b16 %v599
        %v1296 = vunpack.c.h.b16 %v599
        %v1297 = vunpack.c.l.b16 %v600
        %v1298 = vunpack.c.h.b16 %v600
        %v1299 = vunpack.c.l.b16 %v601
        %v1300 = vunpack.c.h.b16 %v601
        %v1301 = vunpack.c.l.b16 %v602
        %v1302 = vunpack.c.h.b16 %v602
        %v1303 = vunpack.c.l.b16 %v603
        %v1304 = vunpack.c.h.b16 %v603
        %v1305 = vunpack.c.l.b16 %v604
        %v1306 = vunpack.c.h.b16 %v604
        %v1307 = vunpack.c.l.b16 %v605
        %v1308 = vunpack.c.h.b16 %v605
        %v1309 = vunpack.c.l.b16 %v606
        %v1310 = vunpack.c.h.b16 %v606
        %v1311 = vunpack.c.l.b16 %v607
        %v1312 = vunpack.c.h.b16 %v607
        %v1313 = vunpack.c.l.b16 %v608
        %v1314 = vunpack.c.h.b16 %v608
        %v1315 = vunpack.c.l.b16 %v609
        %v1316 = vunpack.c.h.b16 %v609
        %v1317 = vunpack.c.l.b16 %v610
        %v1318 = vunpack.c.h.b16 %v610
        %v1319 = vunpack.c.l.b16 %v611
        %v1320 = vunpack.c.h.b16 %v611
        %v1321 = vunpack.c.l.b16 %v612
        %v1322 = vunpack.c.h.b16 %v612
        %v1323 = vunpack.c.l.b16 %v613
        %v1324 = vunpack.c.h.b16 %v613
        %v1325 = vunpack.c.l.b16 %v614
        %v1326 = vunpack.c.h.b16 %v614
        %v1327 = vunpack.c.l.b16 %v615
        %v1328 = vunpack.c.h.b16 %v615
        %v1329 = vunpack.c.l.b16 %v616
        %v1330 = vunpack.c.h.b16 %v616
        %v1331 = vunpack.c.l.b16 %v617
        %v1332 = vunpack.c.h.b16 %v617
        %v1333 = vunpack.c.l.b16 %v618
        %v1334 = vunpack.c.h.b16 %v618
        %v1335 = vunpack.c.l.b16 %v619
        %v1336 = vunpack.c.h.b16 %v619
        %v1337 = vunpack.c.l.b16 %v620
        %v1338 = vunpack.c.h.b16 %v620
        %v1339 = vunpack.c.l.b16 %v621
        %v1340 = vunpack.c.h.b16 %v621
        %v1341 = vunpack.c.l.b16 %v622
        %v1342 = vunpack.c.h.b16 %v622
        %v1343 = vunpack.c.l.b16 %v623
        %v1344 = vunpack.c.h.b16 %v623
        %v1345 = vunpack.c.l.b16 %v624
        %v1346 = vunpack.c.h.b16 %v624
        %v1347 = vunpack.c.l.b16 %v625
        %v1348 = vunpack.c.h.b16 %v625
        %v1349 = vunpack.c.l.b16 %v626
        %v1350 = vunpack.c.h.b16 %v626
        %v1351 = vunpack.c.l.b16 %v627
        %v1352 = vunpack.c.h.b16 %v627
        %v1353 = vunpack.c.l.b16 %v628
        %v1354 = vunpack.c.h.b16 %v628
        %v1355 = vunpack.c.l.b16 %v629
        %v1356 = vunpack.c.h.b16 %v629
        %v1357 = vunpack.c.l.b16 %v630
        %v1358 = vunpack.c.h.b16 %v630
        %v1359 = vunpack.c.l.b16 %v631
        %v1360 = vunpack.c.h.b16 %v631
        %v1361 = vunpack.c.l.b16 %v632
        %v1362 = vunpack.c.h.b16 %v632
        %v1363 = vunpack.c.l.b16 %v633
        %v1364 = vunpack.c.h.b16 %v633
        %v1365 = vunpack.c.l.b16 %v634
        %v1366 = vunpack.c.h.b16 %v634
        %v1367 = vunpack.c.l.b16 %v635
        %v1368 = vunpack.c.h.b16 %v635
        %v1369 = vunpack.c.l.b16 %v636
        %v1370 = vunpack.c.h.b16 %v636
        %v1371 = vunpack.c.l.b16 %v637
        %v1372 = vunpack.c.h.b16 %v637
        %v1373 = vunpack.c.l.b16 %v638
        %v1374 = vunpack.c.h.b16 %v638
        %v1375 = vunpack.c.l.b16 %v639
        %v1376 = vunpack.c.h.b16 %v639
        %v1377 = vunpack.c.l.b16 %v640
        %v1378 = vunpack.c.h.b16 %v640
        %v1379 = vunpack.c.l.b16 %v641
        %v1380 = vunpack.c.h.b16 %v641
        %v1381 = vunpack.c.l.b16 %v642
        %v1382 = vunpack.c.h.b16 %v642
        %v1383 = vunpack.c.l.b16 %v643
        %v1384 = vunpack.c.h.b16 %v643
        %v1385 = vunpack.c.l.b16 %v644
        %v1386 = vunpack.c.h.b16 %v644
        %v1387 = vunpack.c.l.b16 %v645
        %v1388 = vunpack.c.h.b16 %v645
        %v1389 = vunpack.c.l.b16 %v646
        %v1390 = vunpack.c.h.b16 %v646
        %v1391 = vunpack.c.l.b16 %v647
        %v1392 = vunpack.c.h.b16 %v647
        %v1393 = vunpack.c.l.b16 %v648
        %v1394 = vunpack.c.h.b16 %v648
        %v1395 = vunpack.c.l.b16 %v649
        %v1396 = vunpack.c.h.b16 %v649
        %v1397 = vunpack.c.l.b16 %v650
        %v1398 = vunpack.c.h.b16 %v650
        %v1399 = vunpack.c.l.b16 %v651
        %v1400 = vunpack.c.h.b16 %v651
        %v1401 = vunpack.c.l.b16 %v652
        %v1402 = vunpack.c.h.b16 %v652
        %v1403 = vunpack.c.l.b16 %v653
        %v1404 = vunpack.c.h.b16 %v653
        %v1405 = vunpack.c.l.b16 %v654
        %v1406 = vunpack.c.h.b16 %v654
        %v1407 = vunpack.c.l.b16 %v655
        %v1408 = vunpack.c.h.b16 %v655
        %v1409 = vunpack.c.l.b16 %v656
        %v1410 = vunpack.c.h.b16 %v656
        %v1411 = vunpack.c.l.b16 %v657
        %v1412 = vunpack.c.h.b16 %v657
        %v1413 = vunpack.c.l.b16 %v658
        %v1414 = vunpack.c.h.b16 %v658
        %v1415 = vunpack.c.l.b16 %v659
        %v1416 = vunpack.c.h.b16 %v659
        %v1417 = vunpack.c.l.b16 %v660
        %v1418 = vunpack.c.h.b16 %v660
        %v1419 = vunpack.c.l.b16 %v661
        %v1420 = vunpack.c.h.b16 %v661
        %v1421 = vunpack.c.l.b16 %v662
        %v1422 = vunpack.c.h.b16 %v662
        %v1423 = vunpack.c.l.b16 %v663
        %v1424 = vunpack.c.h.b16 %v663
        %v1425 = vunpack.c.l.b16 %v664
        %v1426 = vunpack.c.h.b16 %v664
        %v1427 = vunpack.c.l.b16 %v665
        %v1428 = vunpack.c.h.b16 %v665
        %v1429 = vunpack.c.l.b16 %v666
        %v1430 = vunpack.c.h.b16 %v666
        %v1431 = vunpack.c.l.b16 %v667
        %v1432 = vunpack.c.h.b16 %v667
        %v1433 = vunpack.c.l.b16 %v668
        %v1434 = vunpack.c.h.b16 %v668
        %v1435 = vunpack.c.l.b16 %v669
        %v1436 = vunpack.c.h.b16 %v669
        %v1437 = vunpack.c.l.b16 %v670
        %v1438 = vunpack.c.h.b16 %v670
        %v1439 = vunpack.c.l.b16 %v671
        %v1440 = vunpack.c.h.b16 %v671
        %v1441 = vunpack.c.l.b16 %v672
        %v1442 = vunpack.c.h.b16 %v672
        %v1443 = vunpack.c.l.b16 %v673
        %v1444 = vunpack.c.h.b16 %v673
        %v1445 = vunpack.c.l.b16 %v674
        %v1446 = vunpack.c.h.b16 %v674
        %v1447 = vunpack.c.l.b16 %v675
        %v1448 = vunpack.c.h.b16 %v675
        %v1449 = vunpack.c.l.b16 %v676
        %v1450 = vunpack.c.h.b16 %v676
        %v1451 = vunpack.c.l.b16 %v677
        %v1452 = vunpack.c.h.b16 %v677
        %v1453 = vunpack.c.l.b16 %v678
        %v1454 = vunpack.c.h.b16 %v678
        %v1455 = vunpack.c.l.b16 %v679
        %v1456 = vunpack.c.h.b16 %v679
        %v1457 = vunpack.c.l.b16 %v680
        %v1458 = vunpack.c.h.b16 %v680
        %v1459 = vunpack.c.l.b16 %v681
        %v1460 = vunpack.c.h.b16 %v681
        %v1461 = vunpack.c.l.b16 %v682
        %v1462 = vunpack.c.h.b16 %v682
        %v1463 = vunpack.c.l.b16 %v683
        %v1464 = vunpack.c.h.b16 %v683
        %v1465 = vunpack.c.l.b16 %v684
        %v1466 = vunpack.c.h.b16 %v684
        %v1467 = vpack.c.b16 %v963, %v955
        %v1468 = vpack.c.b16 %v964, %v956
        %v1469 = vpack.c.b16 %v965, %v957
        %v1470 = vpack.c.b16 %v966, %v958
        %v1471 = vpack.c.b16 %v967, %v959
        %v1472 = vpack.c.b16 %v968, %v960
        %v1473 = vpack.c.b16 %v969, %v961
        %v1474 = vpack.c.b16 %v970, %v962
        %v1475 = vpack.c.b16 %v979, %v971
        %v1476 = vpack.c.b16 %v980, %v972
        %v1477 = vpack.c.b16 %v981, %v973
        %v1478 = vpack.c.b16 %v982, %v974
        %v1479 = vpack.c.b16 %v983, %v975
        %v1480 = vpack.c.b16 %v984, %v976
        %v1481 = vpack.c.b16 %v985, %v977
        %v1482 = vpack.c.b16 %v986, %v978
        %v1483 = vpack.c.b16 %v995, %v987
        %v1484 = vpack.c.b16 %v996, %v988
        %v1485 = vpack.c.b16 %v997, %v989
        %v1486 = vpack.c.b16 %v998, %v990
        %v1487 = vpack.c.b16 %v999, %v991
        %v1488 = vpack.c.b16 %v1000, %v992
        %v1489 = vpack.c.b16 %v1001, %v993
        %v1490 = vpack.c.b16 %v1002, %v994
        %v1491 = vpack.c.b16 %v1011, %v1003
        %v1492 = vpack.c.b16 %v1012, %v1004
        %v1493 = vpack.c.b16 %v1013, %v1005
        %v1494 = vpack.c.b16 %v1014, %v1006
        %v1495 = vpack.c.b16 %v1015, %v1007
        %v1496 = vpack.c.b16 %v1016, %v1008
        %v1497 = vpack.c.b16 %v1017, %v1009
        %v1498 = vpack.c.b16 %v1018, %v1010
        %v1499 = vpack.c.b16 %v1027, %v1019
        %v1500 = vpack.c.b16 %v1028, %v1020
        %v1501 = vpack.c.b16 %v1029, %v1021
        %v1502 = vpack.c.b16 %v1030, %v1022
        %v1503 = vpack.c.b16 %v1031, %v1023
        %v1504 = vpack.c.b16 %v1032, %v1024
        %v1505 = vpack.c.b16 %v1033, %v1025
        %v1506 = vpack.c.b16 %v1034, %v1026
        %v1507 = vpack.c.b16 %v1043, %v1035
        %v1508 = vpack.c.b16 %v1044, %v1036
        %v1509 = vpack.c.b16 %v1045, %v1037
        %v1510 = vpack.c.b16 %v1046, %v1038
        %v1511 = vpack.c.b16 %v1047, %v1039
        %v1512 = vpack.c.b16 %v1048, %v1040
        %v1513 = vpack.c.b16 %v1049, %v1041
        %v1514 = vpack.c.b16 %v1050, %v1042
        %v1515 = vpack.c.b16 %v1059, %v1051
        %v1516 = vpack.c.b16 %v1060, %v1052
        %v1517 = vpack.c.b16 %v1061, %v1053
        %v1518 = vpack.c.b16 %v1062, %v1054
        %v1519 = vpack.c.b16 %v1063, %v1055
        %v1520 = vpack.c.b16 %v1064, %v1056
        %v1521 = vpack.c.b16 %v1065, %v1057
        %v1522 = vpack.c.b16 %v1066, %v1058
        %v1523 = vpack.c.b16 %v1075, %v1067
        %v1524 = vpack.c.b16 %v1076, %v1068
        %v1525 = vpack.c.b16 %v1077, %v1069
        %v1526 = vpack.c.b16 %v1078, %v1070
        %v1527 = vpack.c.b16 %v1079, %v1071
        %v1528 = vpack.c.b16 %v1080, %v1072
        %v1529 = vpack.c.b16 %v1081, %v1073
        %v1530 = vpack.c.b16 %v1082, %v1074
        %v1531 = vpack.c.b16 %v1091, %v1083
        %v1532 = vpack.c.b16 %v1092, %v1084
        %v1533 = vpack.c.b16 %v1093, %v1085
        %v1534 = vpack.c.b16 %v1094, %v1086
        %v1535 = vpack.c.b16 %v1095, %v1087
        %v1536 = vpack.c.b16 %v1096, %v1088
        %v1537 = vpack.c.b16 %v1097, %v1089
        %v1538 = vpack.c.b16 %v1098, %v1090
        %v1539 = vpack.c.b16 %v1107, %v1099
        %v1540 = vpack.c.b16 %v1108, %v1100
        %v1541 = vpack.c.b16 %v1109, %v1101
        %v1542 = vpack.c.b16 %v1110, %v1102
        %v1543 = vpack.c.b16 %v1111, %v1103
        %v1544 = vpack.c.b16 %v1112, %v1104
        %v1545 = vpack.c.b16 %v1113, %v1105
        %v1546 = vpack.c.b16 %v1114, %v1106
        %v1547 = vpack.c.b16 %v1123, %v1115
        %v1548 = vpack.c.b16 %v1124, %v1116
        %v1549 = vpack.c.b16 %v1125, %v1117
        %v1550 = vpack.c.b16 %v1126, %v1118
        %v1551 = vpack.c.b16 %v1127, %v1119
        %v1552 = vpack.c.b16 %v1128, %v1120
        %v1553 = vpack.c.b16 %v1129, %v1121
        %v1554 = vpack.c.b16 %v1130, %v1122
        %v1555 = vpack.c.b16 %v1139, %v1131
        %v1556 = vpack.c.b16 %v1140, %v1132
        %v1557 = vpack.c.b16 %v1141, %v1133
        %v1558 = vpack.c.b16 %v1142, %v1134
        %v1559 = vpack.c.b16 %v1143, %v1135
        %v1560 = vpack.c.b16 %v1144, %v1136
        %v1561 = vpack.c.b16 %v1145, %v1137
        %v1562 = vpack.c.b16 %v1146, %v1138
        %v1563 = vpack.c.b16 %v1155, %v1147
        %v1564 = vpack.c.b16 %v1156, %v1148
        %v1565 = vpack.c.b16 %v1157, %v1149
        %v1566 = vpack.c.b16 %v1158, %v1150
        %v1567 = vpack.c.b16 %v1159, %v1151
        %v1568 = vpack.c.b16 %v1160, %v1152
        %v1569 = vpack.c.b16 %v1161, %v1153
        %v1570 = vpack.c.b16 %v1162, %v1154
        %v1571 = vpack.c.b16 %v1171, %v1163
        %v1572 = vpack.c.b16 %v1172, %v1164
        %v1573 = vpack.c.b16 %v1173, %v1165
        %v1574 = vpack.c.b16 %v1174, %v1166
        %v1575 = vpack.c.b16 %v1175, %v1167
        %v1576 = vpack.c.b16 %v1176, %v1168
        %v1577 = vpack.c.b16 %v1177, %v1169
        %v1578 = vpack.c.b16 %v1178, %v1170
        %v1579 = vpack.c.b16 %v1187, %v1179
        %v1580 = vpack.c.b16 %v1188, %v1180
        %v1581 = vpack.c.b16 %v1189, %v1181
        %v1582 = vpack.c.b16 %v1190, %v1182
        %v1583 = vpack.c.b16 %v1191, %v1183
        %v1584 = vpack.c.b16 %v1192, %v1184
        %v1585 = vpack.c.b16 %v1193, %v1185
        %v1586 = vpack.c.b16 %v1194, %v1186
        %v1587 = vpack.c.b16 %v1203, %v1195
        %v1588 = vpack.c.b16 %v1204, %v1196
        %v1589 = vpack.c.b16 %v1205, %v1197
        %v1590 = vpack.c.b16 %v1206, %v1198
        %v1591 = vpack.c.b16 %v1207, %v1199
        %v1592 = vpack.c.b16 %v1208, %v1200
        %v1593 = vpack.c.b16 %v1209, %v1201
        %v1594 = vpack.c.b16 %v1210, %v1202
        %v1595 = vpack.c.b16 %v1219, %v1211
        %v1596 = vpack.c.b16 %v1220, %v1212
        %v1597 = vpack.c.b16 %v1221, %v1213
        %v1598 = vpack.c.b16 %v1222, %v1214
        %v1599 = vpack.c.b16 %v1223, %v1215
        %v1600 = vpack.c.b16 %v1224, %v1216
        %v1601 = vpack.c.b16 %v1225, %v1217
        %v1602 = vpack.c.b16 %v1226, %v1218
        %v1603 = vpack.c.b16 %v1235, %v1227
        %v1604 = vpack.c.b16 %v1236, %v1228
        %v1605 = vpack.c.b16 %v1237, %v1229
        %v1606 = vpack.c.b16 %v1238, %v1230
        %v1607 = vpack.c.b16 %v1239, %v1231
        %v1608 = vpack.c.b16 %v1240, %v1232
        %v1609 = vpack.c.b16 %v1241, %v1233
        %v1610 = vpack.c.b16 %v1242, %v1234
        %v1611 = vpack.c.b16 %v1251, %v1243
        %v1612 = vpack.c.b16 %v1252, %v1244
        %v1613 = vpack.c.b16 %v1253, %v1245
        %v1614 = vpack.c.b16 %v1254, %v1246
        %v1615 = vpack.c.b16 %v1255, %v1247
        %v1616 = vpack.c.b16 %v1256, %v1248
        %v1617 = vpack.c.b16 %v1257, %v1249
        %v1618 = vpack.c.b16 %v1258, %v1250
        %v1619 = vpack.c.b16 %v1267, %v1259
        %v1620 = vpack.c.b16 %v1268, %v1260
        %v1621 = vpack.c.b16 %v1269, %v1261
        %v1622 = vpack.c.b16 %v1270, %v1262
        %v1623 = vpack.c.b16 %v1271, %v1263
        %v1624 = vpack.c.b16 %v1272, %v1264
        %v1625 = vpack.c.b16 %v1273, %v1265
        %v1626 = vpack.c.b16 %v1274, %v1266
        %v1627 = vpack.c.b16 %v1283, %v1275
        %v1628 = vpack.c.b16 %v1284, %v1276
        %v1629 = vpack.c.b16 %v1285, %v1277
        %v1630 = vpack.c.b16 %v1286, %v1278
        %v1631 = vpack.c.b16 %v1287, %v1279
        %v1632 = vpack.c.b16 %v1288, %v1280
        %v1633 = vpack.c.b16 %v1289, %v1281
        %v1634 = vpack.c.b16 %v1290, %v1282
        %v1635 = vpack.c.b16 %v1299, %v1291
        %v1636 = vpack.c.b16 %v1300, %v1292
        %v1637 = vpack.c.b16 %v1301, %v1293
        %v1638 = vpack.c.b16 %v1302, %v1294
        %v1639 = vpack.c.b16 %v1303, %v1295
        %v1640 = vpack.c.b16 %v1304, %v1296
        %v1641 = vpack.c.b16 %v1305, %v1297
        %v1642 = vpack.c.b16 %v1306, %v1298
        %v1643 = vpack.c.b16 %v1315, %v1307
        %v1644 = vpack.c.b16 %v1316, %v1308
        %v1645 = vpack.c.b16 %v1317, %v1309
        %v1646 = vpack.c.b16 %v1318, %v1310
        %v1647 = vpack.c.b16 %v1319, %v1311
        %v1648 = vpack.c.b16 %v1320, %v1312
        %v1649 = vpack.c.b16 %v1321, %v1313
        %v1650 = vpack.c.b16 %v1322, %v1314
        %v1651 = vpack.c.b16 %v1331, %v1323
        %v1652 = vpack.c.b16 %v1332, %v1324
        %v1653 = vpack.c.b16 %v1333, %v1325
        %v1654 = vpack.c.b16 %v1334, %v1326
        %v1655 = vpack.c.b16 %v1335, %v1327
        %v1656 = vpack.c.b16 %v1336, %v1328
        %v1657 = vpack.c.b16 %v1337, %v1329
        %v1658 = vpack.c.b16 %v1338, %v1330
        %v1659 = vpack.c.b16 %v1347, %v1339
        %v1660 = vpack.c.b16 %v1348, %v1340
        %v1661 = vpack.c.b16 %v1349, %v1341
        %v1662 = vpack.c.b16 %v1350, %v1342
        %v1663 = vpack.c.b16 %v1351, %v1343
        %v1664 = vpack.c.b16 %v1352, %v1344
        %v1665 = vpack.c.b16 %v1353, %v1345
        %v1666 = vpack.c.b16 %v1354, %v1346
        %v1667 = vpack.c.b16 %v1363, %v1355
        %v1668 = vpack.c.b16 %v1364, %v1356
        %v1669 = vpack.c.b16 %v1365, %v1357
        %v1670 = vpack.c.b16 %v1366, %v1358
        %v1671 = vpack.c.b16 %v1367, %v1359
        %v1672 = vpack.c.b16 %v1368, %v1360
        %v1673 = vpack.c.b16 %v1369, %v1361
        %v1674 = vpack.c.b16 %v1370, %v1362
        %v1675 = vpack.c.b16 %v1379, %v1371
        %v1676 = vpack.c.b16 %v1380, %v1372
        %v1677 = vpack.c.b16 %v1381, %v1373
        %v1678 = vpack.c.b16 %v1382, %v1374
        %v1679 = vpack.c.b16 %v1383, %v1375
        %v1680 = vpack.c.b16 %v1384, %v1376
        %v1681 = vpack.c.b16 %v1385, %v1377
        %v1682 = vpack.c.b16 %v1386, %v1378
        %v1683 = vpack.c.b16 %v1395, %v1387
        %v1684 = vpack.c.b16 %v1396, %v1388
        %v1685 = vpack.c.b16 %v1397, %v1389
        %v1686 = vpack.c.b16 %v1398, %v1390
        %v1687 = vpack.c.b16 %v1399, %v1391
        %v1688 = vpack.c.b16 %v1400, %v1392
        %v1689 = vpack.c.b16 %v1401, %v1393
        %v1690 = vpack.c.b16 %v1402, %v1394
        %v1691 = vpack.c.b16 %v1411, %v1403
        %v1692 = vpack.c.b16 %v1412, %v1404
        %v1693 = vpack.c.b16 %v1413, %v1405
        %v1694 = vpack.c.b16 %v1414, %v1406
        %v1695 = vpack.c.b16 %v1415, %v1407
        %v1696 = vpack.c.b16 %v1416, %v1408
        %v1697 = vpack.c.b16 %v1417, %v1409
        %v1698 = vpack.c.b16 %v1418, %v1410
        %v1699 = vpack.c.b16 %v1427, %v1419
        %v1700 = vpack.c.b16 %v1428, %v1420
        %v1701 = vpack.c.b16 %v1429, %v1421
        %v1702 = vpack.c.b16 %v1430, %v1422
        %v1703 = vpack.c.b16 %v1431, %v1423
        %v1704 = vpack.c.b16 %v1432, %v1424
        %v1705 = vpack.c.b16 %v1433, %v1425
        %v1706 = vpack.c.b16 %v1434, %v1426
        %v1707 = vpack.c.b16 %v1443, %v1435
        %v1708 = vpack.c.b16 %v1444, %v1436
        %v1709 = vpack.c.b16 %v1445, %v1437
        %v1710 = vpack.c.b16 %v1446, %v1438
        %v1711 = vpack.c.b16 %v1447, %v1439
        %v1712 = vpack.c.b16 %v1448, %v1440
        %v1713 = vpack.c.b16 %v1449, %v1441
        %v1714 = vpack.c.b16 %v1450, %v1442
        %v1715 = vpack.c.b16 %v1459, %v1451
        %v1716 = vpack.c.b16 %v1460, %v1452
        %v1717 = vpack.c.b16 %v1461, %v1453
        %v1718 = vpack.c.b16 %v1462, %v1454
        %v1719 = vpack.c.b16 %v1463, %v1455
        %v1720 = vpack.c.b16 %v1464, %v1456
        %v1721 = vpack.c.b16 %v1465, %v1457
        %v1722 = vpack.c.b16 %v1466, %v1458
        %1979 = vmatprep.subr.bf16.mxu0 %v1524
        %1980 = vmatpush1.bf16.msra.mxu0 %v1523
        %1981 = vmatprep.subr.bf16.mxu0 %v1516
        %1982 = vmatpush1.bf16.msra.mxu0 %v1515
        %1983 = vmatprep.subr.bf16.mxu0 %v1508
        %1984 = vmatpush1.bf16.msra.mxu0 %v1507
        %1985 = vmatprep.subr.bf16.mxu0 %v1500
        %1986 = vmatpush1.bf16.msra.mxu0 %v1499
        %1987 = vmatprep.subr.bf16.mxu0 %v1492
        %1988 = vmatpush1.bf16.msra.mxu0 %v1491
        %1989 = vmatprep.subr.bf16.mxu0 %v1484
        %1990 = vmatpush1.bf16.msra.mxu0 %v1483
        %1991 = vmatprep.subr.bf16.mxu0 %v1476
        %1992 = vmatpush1.bf16.msra.mxu0 %v1475
        %1993 = vmatprep.subr.bf16.mxu0 %v1468
        %1994 = vmatpush1.bf16.msra.mxu0 %v1467
        %1995 = vmatprep.subr.bf16.mxu0 %v1588
        %1996 = vmatpush2.bf16.msra.mxu0 %v1587
        %1997 = vmatprep.subr.bf16.mxu0 %v1580
        %1998 = vmatpush2.bf16.msra.mxu0 %v1579
        %1999 = vmatprep.subr.bf16.mxu0 %v1572
        %2000 = vmatpush2.bf16.msra.mxu0 %v1571
        %2001 = vmatprep.subr.bf16.mxu0 %v1564
        %2002 = vmatpush2.bf16.msra.mxu0 %v1563
        %2003 = vmatprep.subr.bf16.mxu0 %v1556
        %2004 = vmatpush2.bf16.msra.mxu0 %v1555
        %2005 = vmatprep.subr.bf16.mxu0 %v1548
        %2006 = vmatpush2.bf16.msra.mxu0 %v1547
        %2007 = vmatprep.subr.bf16.mxu0 %v1540
        %2008 = vmatpush2.bf16.msra.mxu0 %v1539
        %2009 = vmatprep.subr.bf16.mxu0 %v1532
        %2010 = vmatpush2.bf16.msra.mxu0 %v1531
        %2011 = vmatprep.mubr.bf16.mxu0 %v692
        %2012 = vmatmul.mubr.bf16.gmra.mxu0 %v691
        %v2013 = vpop.f32.mrf.mxu0
        %v2014 = vadd.f32 0.0, %v2013
        %v2015 = vpop.f32.mrf.mxu0
        %v2016 = vadd.f32 0.0, %v2015
        %v2017 = vpop.f32.mrf.mxu0
        %v2018 = vpop.f32.mrf.mxu0
        %2019 = vdwg.mxu0
        %2020 = vmatprep.subr.bf16.mxu0 %v1652
        %2021 = vmatpush1.bf16.msra.mxu0 %v1651
        %2022 = vmatprep.subr.bf16.mxu0 %v1644
        %2023 = vmatpush1.bf16.msra.mxu0 %v1643
        %2024 = vmatprep.subr.bf16.mxu0 %v1636
        %2025 = vmatpush1.bf16.msra.mxu0 %v1635
        %2026 = vmatprep.subr.bf16.mxu0 %v1628
        %2027 = vmatpush1.bf16.msra.mxu0 %v1627
        %2028 = vmatprep.subr.bf16.mxu0 %v1620
        %2029 = vmatpush1.bf16.msra.mxu0 %v1619
        %2030 = vmatprep.subr.bf16.mxu0 %v1612
        %2031 = vmatpush1.bf16.msra.mxu0 %v1611
        %2032 = vmatprep.subr.bf16.mxu0 %v1604
        %2033 = vmatpush1.bf16.msra.mxu0 %v1603
        %2034 = vmatprep.subr.bf16.mxu0 %v1596
        %2035 = vmatpush1.bf16.msra.mxu0 %v1595
        %2036 = vmatprep.subr.bf16.mxu0 %v1716
        %2037 = vmatpush2.bf16.msra.mxu0 %v1715
        %2038 = vmatprep.subr.bf16.mxu0 %v1708
        %2039 = vmatpush2.bf16.msra.mxu0 %v1707
        %2040 = vmatprep.subr.bf16.mxu0 %v1700
        %2041 = vmatpush2.bf16.msra.mxu0 %v1699
        %2042 = vmatprep.subr.bf16.mxu0 %v1692
        %2043 = vmatpush2.bf16.msra.mxu0 %v1691
        %2044 = vmatprep.subr.bf16.mxu0 %v1684
        %2045 = vmatpush2.bf16.msra.mxu0 %v1683
        %2046 = vmatprep.subr.bf16.mxu0 %v1676
        %2047 = vmatpush2.bf16.msra.mxu0 %v1675
        %2048 = vmatprep.subr.bf16.mxu0 %v1668
        %2049 = vmatpush2.bf16.msra.mxu0 %v1667
        %2050 = vmatprep.subr.bf16.mxu0 %v1660
        %2051 = vmatpush2.bf16.msra.mxu0 %v1659
        %2052 = vmatprep.mubr.bf16.mxu0 %v694
        %2053 = vmatmul.mubr.bf16.gmra.mxu0 %v693
        %v2054 = vpop.f32.mrf.mxu0
        %v2055 = vadd.f32 %v2014, %v2054
        %v2056 = vpop.f32.mrf.mxu0
        %v2057 = vadd.f32 %v2016, %v2056
        %v2058 = vpop.f32.mrf.mxu0
        %v2059 = vpop.f32.mrf.mxu0
        %2060 = vdwg.mxu0
        %2061 = vmatprep.subr.bf16.mxu0 %v1526
        %2062 = vmatpush1.bf16.msra.mxu0 %v1525
        %2063 = vmatprep.subr.bf16.mxu0 %v1518
        %2064 = vmatpush1.bf16.msra.mxu0 %v1517
        %2065 = vmatprep.subr.bf16.mxu0 %v1510
        %2066 = vmatpush1.bf16.msra.mxu0 %v1509
        %2067 = vmatprep.subr.bf16.mxu0 %v1502
        %2068 = vmatpush1.bf16.msra.mxu0 %v1501
        %2069 = vmatprep.subr.bf16.mxu0 %v1494
        %2070 = vmatpush1.bf16.msra.mxu0 %v1493
        %2071 = vmatprep.subr.bf16.mxu0 %v1486
        %2072 = vmatpush1.bf16.msra.mxu0 %v1485
        %2073 = vmatprep.subr.bf16.mxu0 %v1478
        %2074 = vmatpush1.bf16.msra.mxu0 %v1477
        %2075 = vmatprep.subr.bf16.mxu0 %v1470
        %2076 = vmatpush1.bf16.msra.mxu0 %v1469
        %2077 = vmatprep.subr.bf16.mxu0 %v1590
        %2078 = vmatpush2.bf16.msra.mxu0 %v1589
        %2079 = vmatprep.subr.bf16.mxu0 %v1582
        %2080 = vmatpush2.bf16.msra.mxu0 %v1581
        %2081 = vmatprep.subr.bf16.mxu0 %v1574
        %2082 = vmatpush2.bf16.msra.mxu0 %v1573
        %2083 = vmatprep.subr.bf16.mxu0 %v1566
        %2084 = vmatpush2.bf16.msra.mxu0 %v1565
        %2085 = vmatprep.subr.bf16.mxu0 %v1558
        %2086 = vmatpush2.bf16.msra.mxu0 %v1557
        %2087 = vmatprep.subr.bf16.mxu0 %v1550
        %2088 = vmatpush2.bf16.msra.mxu0 %v1549
        %2089 = vmatprep.subr.bf16.mxu0 %v1542
        %2090 = vmatpush2.bf16.msra.mxu0 %v1541
        %2091 = vmatprep.subr.bf16.mxu0 %v1534
        %2092 = vmatpush2.bf16.msra.mxu0 %v1533
        %2093 = vmatprep.mubr.bf16.mxu0 %v692
        %2094 = vmatmul.mubr.bf16.gmra.mxu0 %v691
        %v2095 = vpop.f32.mrf.mxu0
        %v2096 = vadd.f32 0.0, %v2095
        %v2097 = vpop.f32.mrf.mxu0
        %v2098 = vadd.f32 0.0, %v2097
        %v2099 = vpop.f32.mrf.mxu0
        %v2100 = vpop.f32.mrf.mxu0
        %2101 = vdwg.mxu0
        %2102 = vmatprep.subr.bf16.mxu0 %v1654
        %2103 = vmatpush1.bf16.msra.mxu0 %v1653
        %2104 = vmatprep.subr.bf16.mxu0 %v1646
        %2105 = vmatpush1.bf16.msra.mxu0 %v1645
        %2106 = vmatprep.subr.bf16.mxu0 %v1638
        %2107 = vmatpush1.bf16.msra.mxu0 %v1637
        %2108 = vmatprep.subr.bf16.mxu0 %v1630
        %2109 = vmatpush1.bf16.msra.mxu0 %v1629
        %2110 = vmatprep.subr.bf16.mxu0 %v1622
        %2111 = vmatpush1.bf16.msra.mxu0 %v1621
        %2112 = vmatprep.subr.bf16.mxu0 %v1614
        %2113 = vmatpush1.bf16.msra.mxu0 %v1613
        %2114 = vmatprep.subr.bf16.mxu0 %v1606
        %2115 = vmatpush1.bf16.msra.mxu0 %v1605
        %2116 = vmatprep.subr.bf16.mxu0 %v1598
        %2117 = vmatpush1.bf16.msra.mxu0 %v1597
        %2118 = vmatprep.subr.bf16.mxu0 %v1718
        %2119 = vmatpush2.bf16.msra.mxu0 %v1717
        %2120 = vmatprep.subr.bf16.mxu0 %v1710
        %2121 = vmatpush2.bf16.msra.mxu0 %v1709
        %2122 = vmatprep.subr.bf16.mxu0 %v1702
        %2123 = vmatpush2.bf16.msra.mxu0 %v1701
        %2124 = vmatprep.subr.bf16.mxu0 %v1694
        %2125 = vmatpush2.bf16.msra.mxu0 %v1693
        %2126 = vmatprep.subr.bf16.mxu0 %v1686
        %2127 = vmatpush2.bf16.msra.mxu0 %v1685
        %2128 = vmatprep.subr.bf16.mxu0 %v1678
        %2129 = vmatpush2.bf16.msra.mxu0 %v1677
        %2130 = vmatprep.subr.bf16.mxu0 %v1670
        %2131 = vmatpush2.bf16.msra.mxu0 %v1669
        %2132 = vmatprep.subr.bf16.mxu0 %v1662
        %2133 = vmatpush2.bf16.msra.mxu0 %v1661
        %2134 = vmatprep.mubr.bf16.mxu0 %v694
        %2135 = vmatmul.mubr.bf16.gmra.mxu0 %v693
        %v2136 = vpop.f32.mrf.mxu0
        %v2137 = vadd.f32 %v2096, %v2136
        %v2138 = vpop.f32.mrf.mxu0
        %v2139 = vadd.f32 %v2098, %v2138
        %v2140 = vpop.f32.mrf.mxu0
        %v2141 = vpop.f32.mrf.mxu0
        %2142 = vdwg.mxu0
        %2143 = vmatprep.subr.bf16.mxu0 %v1528
        %2144 = vmatpush1.bf16.msra.mxu0 %v1527
        %2145 = vmatprep.subr.bf16.mxu0 %v1520
        %2146 = vmatpush1.bf16.msra.mxu0 %v1519
        %2147 = vmatprep.subr.bf16.mxu0 %v1512
        %2148 = vmatpush1.bf16.msra.mxu0 %v1511
        %2149 = vmatprep.subr.bf16.mxu0 %v1504
        %2150 = vmatpush1.bf16.msra.mxu0 %v1503
        %2151 = vmatprep.subr.bf16.mxu0 %v1496
        %2152 = vmatpush1.bf16.msra.mxu0 %v1495
        %2153 = vmatprep.subr.bf16.mxu0 %v1488
        %2154 = vmatpush1.bf16.msra.mxu0 %v1487
        %2155 = vmatprep.subr.bf16.mxu0 %v1480
        %2156 = vmatpush1.bf16.msra.mxu0 %v1479
        %2157 = vmatprep.subr.bf16.mxu0 %v1472
        %2158 = vmatpush1.bf16.msra.mxu0 %v1471
        %2159 = vmatprep.subr.bf16.mxu0 %v1592
        %2160 = vmatpush2.bf16.msra.mxu0 %v1591
        %2161 = vmatprep.subr.bf16.mxu0 %v1584
        %2162 = vmatpush2.bf16.msra.mxu0 %v1583
        %2163 = vmatprep.subr.bf16.mxu0 %v1576
        %2164 = vmatpush2.bf16.msra.mxu0 %v1575
        %2165 = vmatprep.subr.bf16.mxu0 %v1568
        %2166 = vmatpush2.bf16.msra.mxu0 %v1567
        %2167 = vmatprep.subr.bf16.mxu0 %v1560
        %2168 = vmatpush2.bf16.msra.mxu0 %v1559
        %2169 = vmatprep.subr.bf16.mxu0 %v1552
        %2170 = vmatpush2.bf16.msra.mxu0 %v1551
        %2171 = vmatprep.subr.bf16.mxu0 %v1544
        %2172 = vmatpush2.bf16.msra.mxu0 %v1543
        %2173 = vmatprep.subr.bf16.mxu0 %v1536
        %2174 = vmatpush2.bf16.msra.mxu0 %v1535
        %2175 = vmatprep.mubr.bf16.mxu0 %v692
        %2176 = vmatmul.mubr.bf16.gmra.mxu0 %v691
        %v2177 = vpop.f32.mrf.mxu0
        %v2178 = vadd.f32 0.0, %v2177
        %v2179 = vpop.f32.mrf.mxu0
        %v2180 = vadd.f32 0.0, %v2179
        %v2181 = vpop.f32.mrf.mxu0
        %v2182 = vpop.f32.mrf.mxu0
        %2183 = vdwg.mxu0
        %2184 = vmatprep.subr.bf16.mxu0 %v1656
        %2185 = vmatpush1.bf16.msra.mxu0 %v1655
        %2186 = vmatprep.subr.bf16.mxu0 %v1648
        %2187 = vmatpush1.bf16.msra.mxu0 %v1647
        %2188 = vmatprep.subr.bf16.mxu0 %v1640
        %2189 = vmatpush1.bf16.msra.mxu0 %v1639
        %2190 = vmatprep.subr.bf16.mxu0 %v1632
        %2191 = vmatpush1.bf16.msra.mxu0 %v1631
        %2192 = vmatprep.subr.bf16.mxu0 %v1624
        %2193 = vmatpush1.bf16.msra.mxu0 %v1623
        %2194 = vmatprep.subr.bf16.mxu0 %v1616
        %2195 = vmatpush1.bf16.msra.mxu0 %v1615
        %2196 = vmatprep.subr.bf16.mxu0 %v1608
        %2197 = vmatpush1.bf16.msra.mxu0 %v1607
        %2198 = vmatprep.subr.bf16.mxu0 %v1600
        %2199 = vmatpush1.bf16.msra.mxu0 %v1599
        %2200 = vmatprep.subr.bf16.mxu0 %v1720
        %2201 = vmatpush2.bf16.msra.mxu0 %v1719
        %2202 = vmatprep.subr.bf16.mxu0 %v1712
        %2203 = vmatpush2.bf16.msra.mxu0 %v1711
        %2204 = vmatprep.subr.bf16.mxu0 %v1704
        %2205 = vmatpush2.bf16.msra.mxu0 %v1703
        %2206 = vmatprep.subr.bf16.mxu0 %v1696
        %2207 = vmatpush2.bf16.msra.mxu0 %v1695
        %2208 = vmatprep.subr.bf16.mxu0 %v1688
        %2209 = vmatpush2.bf16.msra.mxu0 %v1687
        %2210 = vmatprep.subr.bf16.mxu0 %v1680
        %2211 = vmatpush2.bf16.msra.mxu0 %v1679
        %2212 = vmatprep.subr.bf16.mxu0 %v1672
        %2213 = vmatpush2.bf16.msra.mxu0 %v1671
        %2214 = vmatprep.subr.bf16.mxu0 %v1664
        %2215 = vmatpush2.bf16.msra.mxu0 %v1663
        %2216 = vmatprep.mubr.bf16.mxu0 %v694
        %2217 = vmatmul.mubr.bf16.gmra.mxu0 %v693
        %v2218 = vpop.f32.mrf.mxu0
        %v2219 = vadd.f32 %v2178, %v2218
        %v2220 = vpop.f32.mrf.mxu0
        %v2221 = vadd.f32 %v2180, %v2220
        %v2222 = vpop.f32.mrf.mxu0
        %v2223 = vpop.f32.mrf.mxu0
        %2224 = vdwg.mxu0
        %2225 = vmatprep.subr.bf16.mxu0 %v1530
        %2226 = vmatpush1.bf16.msra.mxu0 %v1529
        %2227 = vmatprep.subr.bf16.mxu0 %v1522
        %2228 = vmatpush1.bf16.msra.mxu0 %v1521
        %2229 = vmatprep.subr.bf16.mxu0 %v1514
        %2230 = vmatpush1.bf16.msra.mxu0 %v1513
        %2231 = vmatprep.subr.bf16.mxu0 %v1506
        %2232 = vmatpush1.bf16.msra.mxu0 %v1505
        %2233 = vmatprep.subr.bf16.mxu0 %v1498
        %2234 = vmatpush1.bf16.msra.mxu0 %v1497
        %2235 = vmatprep.subr.bf16.mxu0 %v1490
        %2236 = vmatpush1.bf16.msra.mxu0 %v1489
        %2237 = vmatprep.subr.bf16.mxu0 %v1482
        %2238 = vmatpush1.bf16.msra.mxu0 %v1481
        %2239 = vmatprep.subr.bf16.mxu0 %v1474
        %2240 = vmatpush1.bf16.msra.mxu0 %v1473
        %2241 = vmatprep.subr.bf16.mxu0 %v1594
        %2242 = vmatpush2.bf16.msra.mxu0 %v1593
        %2243 = vmatprep.subr.bf16.mxu0 %v1586
        %2244 = vmatpush2.bf16.msra.mxu0 %v1585
        %2245 = vmatprep.subr.bf16.mxu0 %v1578
        %2246 = vmatpush2.bf16.msra.mxu0 %v1577
        %2247 = vmatprep.subr.bf16.mxu0 %v1570
        %2248 = vmatpush2.bf16.msra.mxu0 %v1569
        %2249 = vmatprep.subr.bf16.mxu0 %v1562
        %2250 = vmatpush2.bf16.msra.mxu0 %v1561
        %2251 = vmatprep.subr.bf16.mxu0 %v1554
        %2252 = vmatpush2.bf16.msra.mxu0 %v1553
        %2253 = vmatprep.subr.bf16.mxu0 %v1546
        %2254 = vmatpush2.bf16.msra.mxu0 %v1545
        %2255 = vmatprep.subr.bf16.mxu0 %v1538
        %2256 = vmatpush2.bf16.msra.mxu0 %v1537
        %2257 = vmatprep.mubr.bf16.mxu0 %v692
        %2258 = vmatmul.mubr.bf16.gmra.mxu0 %v691
        %v2259 = vpop.f32.mrf.mxu0
        %v2260 = vadd.f32 0.0, %v2259
        %v2261 = vpop.f32.mrf.mxu0
        %v2262 = vadd.f32 0.0, %v2261
        %v2263 = vpop.f32.mrf.mxu0
        %v2264 = vpop.f32.mrf.mxu0
        %2265 = vdwg.mxu0
        %2266 = vmatprep.subr.bf16.mxu0 %v1658
        %2267 = vmatpush1.bf16.msra.mxu0 %v1657
        %2268 = vmatprep.subr.bf16.mxu0 %v1650
        %2269 = vmatpush1.bf16.msra.mxu0 %v1649
        %2270 = vmatprep.subr.bf16.mxu0 %v1642
        %2271 = vmatpush1.bf16.msra.mxu0 %v1641
        %2272 = vmatprep.subr.bf16.mxu0 %v1634
        %2273 = vmatpush1.bf16.msra.mxu0 %v1633
        %2274 = vmatprep.subr.bf16.mxu0 %v1626
        %2275 = vmatpush1.bf16.msra.mxu0 %v1625
        %2276 = vmatprep.subr.bf16.mxu0 %v1618
        %2277 = vmatpush1.bf16.msra.mxu0 %v1617
        %2278 = vmatprep.subr.bf16.mxu0 %v1610
        %2279 = vmatpush1.bf16.msra.mxu0 %v1609
        %2280 = vmatprep.subr.bf16.mxu0 %v1602
        %2281 = vmatpush1.bf16.msra.mxu0 %v1601
        %2282 = vmatprep.subr.bf16.mxu0 %v1722
        %2283 = vmatpush2.bf16.msra.mxu0 %v1721
        %2284 = vmatprep.subr.bf16.mxu0 %v1714
        %2285 = vmatpush2.bf16.msra.mxu0 %v1713
        %2286 = vmatprep.subr.bf16.mxu0 %v1706
        %2287 = vmatpush2.bf16.msra.mxu0 %v1705
        %2288 = vmatprep.subr.bf16.mxu0 %v1698
        %2289 = vmatpush2.bf16.msra.mxu0 %v1697
        %2290 = vmatprep.subr.bf16.mxu0 %v1690
        %2291 = vmatpush2.bf16.msra.mxu0 %v1689
        %2292 = vmatprep.subr.bf16.mxu0 %v1682
        %2293 = vmatpush2.bf16.msra.mxu0 %v1681
        %2294 = vmatprep.subr.bf16.mxu0 %v1674
        %2295 = vmatpush2.bf16.msra.mxu0 %v1673
        %2296 = vmatprep.subr.bf16.mxu0 %v1666
        %2297 = vmatpush2.bf16.msra.mxu0 %v1665
        %2298 = vmatprep.mubr.bf16.mxu0 %v694
        %2299 = vmatmul.mubr.bf16.gmra.mxu0 %v693
        %v2300 = vpop.f32.mrf.mxu0
        %v2301 = vadd.f32 %v2260, %v2300
        %v2302 = vpop.f32.mrf.mxu0
        %v2303 = vadd.f32 %v2262, %v2302
        %v2304 = vpop.f32.mrf.mxu0
        %v2305 = vpop.f32.mrf.mxu0
        %2306 = vdwg.mxu0
        %v2307 = vadd.f32 %v419, %v2055
        %v2308 = vadd.f32 %v420, %v2057
        %v2309 = vadd.f32 %v421, %v2137
        %v2310 = vadd.f32 %v422, %v2139
        %v2311 = vadd.f32 %v423, %v2219
        %v2312 = vadd.f32 %v424, %v2221
        %v2313 = vadd.f32 %v425, %v2301
        %v2314 = vadd.f32 %v426, %v2303
        %2315 = vst [vmem:[#allocation2] sm:$0xff] %v2307
        %2316 = vst [vmem:[#allocation2 + $0x8] sm:$0xff] %v2308
        %2317 = vst [vmem:[#allocation2 + $0x10] sm:$0xff] %v2309
        %2318 = vst [vmem:[#allocation2 + $0x18] sm:$0xff] %v2310
        %2319 = vst [vmem:[#allocation2 + $0x20] sm:$0xff] %v2311
        %2320 = vst [vmem:[#allocation2 + $0x28] sm:$0xff] %v2312
        %2321 = vst [vmem:[#allocation2 + $0x30] sm:$0xff] %v2313
        %2322 = vst [vmem:[#allocation2 + $0x38] sm:$0xff] %v2314
        %p2323 = scmp.eq.s32.totalorder %s33, 3
        // Predicated region
        $region65: #{tpu_custom_call.1} parent=39 // pred_check
          %p2324 = pneg %p2323
        $region66: #{tpu_custom_call.1} parent=39 // pred_check_branch
          %2326 = sbr.rel (%p2324) target = $region68
        $region67: #{tpu_custom_call.1} parent=39 // pred_region
          %v2327 = vld [vmem:[#allocation2] sm:$0xff]
          %v2328 = vld [vmem:[#allocation2 + $0x8] sm:$0xff]
          %v2329 = vld [vmem:[#allocation2 + $0x10] sm:$0xff]
          %v2330 = vld [vmem:[#allocation2 + $0x18] sm:$0xff]
          %v2331 = vld [vmem:[#allocation2 + $0x20] sm:$0xff]
          %v2332 = vld [vmem:[#allocation2 + $0x28] sm:$0xff]
          %v2333 = vld [vmem:[#allocation2 + $0x30] sm:$0xff]
          %v2334 = vld [vmem:[#allocation2 + $0x38] sm:$0xff]
          %v2335 = vld [vmem:[%s341] sm:$0xff]
          %v2337 = vlaneseq
          %v2338 = vshrl.u32 %v2337, 7
          %v2339 = vsub.s32 0, %v2338
          %v2340 = vrot.slane %v2335, %v2339
          %v2341 = vlaneseq
          %v2342 = vshrl.u32 %v2341, 7
          %v2343 = vsub.s32 1, %v2342
          %v2344 = vrot.slane %v2335, %v2343
          %v2345 = vlaneseq
          %v2346 = vshrl.u32 %v2345, 7
          %v2347 = vsub.s32 2, %v2346
          %v2348 = vrot.slane %v2335, %v2347
          %v2349 = vlaneseq
          %v2350 = vshrl.u32 %v2349, 7
          %v2351 = vsub.s32 3, %v2350
          %v2352 = vrot.slane %v2335, %v2351
          %v2353 = vlaneseq
          %v2354 = vshrl.u32 %v2353, 7
          %v2355 = vsub.s32 4, %v2354
          %v2356 = vrot.slane %v2335, %v2355
          %v2357 = vlaneseq
          %v2358 = vshrl.u32 %v2357, 7
          %v2359 = vsub.s32 5, %v2358
          %v2360 = vrot.slane %v2335, %v2359
          %v2361 = vlaneseq
          %v2362 = vshrl.u32 %v2361, 7
          %v2363 = vsub.s32 6, %v2362
          %v2364 = vrot.slane %v2335, %v2363
          %v2365 = vlaneseq
          %v2366 = vshrl.u32 %v2365, 7
          %v2367 = vsub.s32 7, %v2366
          %v2368 = vrot.slane %v2335, %v2367
          %v2377 = vadd.f32 %v2327, %v2340
          %v2378 = vadd.f32 %v2328, %v2344
          %v2379 = vadd.f32 %v2329, %v2348
          %v2380 = vadd.f32 %v2330, %v2352
          %v2381 = vadd.f32 %v2331, %v2356
          %v2382 = vadd.f32 %v2332, %v2360
          %v2383 = vadd.f32 %v2333, %v2364
          %v2384 = vadd.f32 %v2334, %v2368
          %v2385 = vmax.f32 %v2377, 0.0
          %v2386 = vmax.f32 %v2378, 0.0
          %v2387 = vmax.f32 %v2379, 0.0
          %v2388 = vmax.f32 %v2380, 0.0
          %v2389 = vmax.f32 %v2381, 0.0
          %v2390 = vmax.f32 %v2382, 0.0
          %v2391 = vmax.f32 %v2383, 0.0
          %v2392 = vmax.f32 %v2384, 0.0
          %v2393 = vpack.c.bf16 %v2385, %v2385
          %v2394 = vpack.c.bf16 %v2386, %v2386
          %v2395 = vpack.c.bf16 %v2387, %v2387
          %v2396 = vpack.c.bf16 %v2388, %v2388
          %v2397 = vpack.c.bf16 %v2389, %v2389
          %v2398 = vpack.c.bf16 %v2390, %v2390
          %v2399 = vpack.c.bf16 %v2391, %v2391
          %v2400 = vpack.c.bf16 %v2392, %v2392
          %v2401 = vld [vmem:[%s350] sm:$0xf]
          %v2402 = vld [vmem:[%s350 + $0x4] sm:$0xf]
          %v2403 = vld [vmem:[%s350 + $0x8] sm:$0xf]
          %v2404 = vld [vmem:[%s350 + $0xc] sm:$0xf]
          %v2405 = vld [vmem:[%s350 + $0x10] sm:$0xf]
          %v2406 = vld [vmem:[%s350 + $0x14] sm:$0xf]
          %v2407 = vld [vmem:[%s350 + $0x18] sm:$0xf]
          %v2408 = vld [vmem:[%s350 + $0x1c] sm:$0xf]
          %v2409 = vld [vmem:[%s350 + $0x20] sm:$0xf]
          %v2410 = vld [vmem:[%s350 + $0x24] sm:$0xf]
          %v2411 = vld [vmem:[%s350 + $0x28] sm:$0xf]
          %v2412 = vld [vmem:[%s350 + $0x2c] sm:$0xf]
          %v2413 = vld [vmem:[%s350 + $0x30] sm:$0xf]
          %v2414 = vld [vmem:[%s350 + $0x34] sm:$0xf]
          %v2415 = vld [vmem:[%s350 + $0x38] sm:$0xf]
          %v2416 = vld [vmem:[%s350 + $0x3c] sm:$0xf]
          %v2417 = vld [vmem:[%s350 + $0x40] sm:$0xf]
          %v2418 = vld [vmem:[%s350 + $0x44] sm:$0xf]
          %v2419 = vld [vmem:[%s350 + $0x48] sm:$0xf]
          %v2420 = vld [vmem:[%s350 + $0x4c] sm:$0xf]
          %v2421 = vld [vmem:[%s350 + $0x50] sm:$0xf]
          %v2422 = vld [vmem:[%s350 + $0x54] sm:$0xf]
          %v2423 = vld [vmem:[%s350 + $0x58] sm:$0xf]
          %v2424 = vld [vmem:[%s350 + $0x5c] sm:$0xf]
          %v2425 = vld [vmem:[%s350 + $0x60] sm:$0xf]
          %v2426 = vld [vmem:[%s350 + $0x64] sm:$0xf]
          %v2427 = vld [vmem:[%s350 + $0x68] sm:$0xf]
          %v2428 = vld [vmem:[%s350 + $0x6c] sm:$0xf]
          %v2429 = vld [vmem:[%s350 + $0x70] sm:$0xf]
          %v2430 = vld [vmem:[%s350 + $0x74] sm:$0xf]
          %v2431 = vld [vmem:[%s350 + $0x78] sm:$0xf]
          %v2432 = vld [vmem:[%s350 + $0x7c] sm:$0xf]
          %v2433 = vld [vmem:[%s350 + $0x80] sm:$0xf]
          %v2434 = vld [vmem:[%s350 + $0x84] sm:$0xf]
          %v2435 = vld [vmem:[%s350 + $0x88] sm:$0xf]
          %v2436 = vld [vmem:[%s350 + $0x8c] sm:$0xf]
          %v2437 = vld [vmem:[%s350 + $0x90] sm:$0xf]
          %v2438 = vld [vmem:[%s350 + $0x94] sm:$0xf]
          %v2439 = vld [vmem:[%s350 + $0x98] sm:$0xf]
          %v2440 = vld [vmem:[%s350 + $0x9c] sm:$0xf]
          %v2441 = vld [vmem:[%s350 + $0xa0] sm:$0xf]
          %v2442 = vld [vmem:[%s350 + $0xa4] sm:$0xf]
          %v2443 = vld [vmem:[%s350 + $0xa8] sm:$0xf]
          %v2444 = vld [vmem:[%s350 + $0xac] sm:$0xf]
          %v2445 = vld [vmem:[%s350 + $0xb0] sm:$0xf]
          %v2446 = vld [vmem:[%s350 + $0xb4] sm:$0xf]
          %v2447 = vld [vmem:[%s350 + $0xb8] sm:$0xf]
          %v2448 = vld [vmem:[%s350 + $0xbc] sm:$0xf]
          %v2449 = vld [vmem:[%s350 + $0xc0] sm:$0xf]
          %v2450 = vld [vmem:[%s350 + $0xc4] sm:$0xf]
          %v2451 = vld [vmem:[%s350 + $0xc8] sm:$0xf]
          %v2452 = vld [vmem:[%s350 + $0xcc] sm:$0xf]
          %v2453 = vld [vmem:[%s350 + $0xd0] sm:$0xf]
          %v2454 = vld [vmem:[%s350 + $0xd4] sm:$0xf]
          %v2455 = vld [vmem:[%s350 + $0xd8] sm:$0xf]
          %v2456 = vld [vmem:[%s350 + $0xdc] sm:$0xf]
          %v2457 = vld [vmem:[%s350 + $0xe0] sm:$0xf]
          %v2458 = vld [vmem:[%s350 + $0xe4] sm:$0xf]
          %v2459 = vld [vmem:[%s350 + $0xe8] sm:$0xf]
          %v2460 = vld [vmem:[%s350 + $0xec] sm:$0xf]
          %v2461 = vld [vmem:[%s350 + $0xf0] sm:$0xf]
          %v2462 = vld [vmem:[%s350 + $0xf4] sm:$0xf]
          %v2463 = vld [vmem:[%s350 + $0xf8] sm:$0xf]
          %v2464 = vld [vmem:[%s350 + $0xfc] sm:$0xf]
          %v2465 = vld [vmem:[%s350 + $0x100] sm:$0xf]
          %v2466 = vld [vmem:[%s350 + $0x104] sm:$0xf]
          %v2467 = vld [vmem:[%s350 + $0x108] sm:$0xf]
          %v2468 = vld [vmem:[%s350 + $0x10c] sm:$0xf]
          %v2469 = vld [vmem:[%s350 + $0x110] sm:$0xf]
          %v2470 = vld [vmem:[%s350 + $0x114] sm:$0xf]
          %v2471 = vld [vmem:[%s350 + $0x118] sm:$0xf]
          %v2472 = vld [vmem:[%s350 + $0x11c] sm:$0xf]
          %v2473 = vld [vmem:[%s350 + $0x120] sm:$0xf]
          %v2474 = vld [vmem:[%s350 + $0x124] sm:$0xf]
          %v2475 = vld [vmem:[%s350 + $0x128] sm:$0xf]
          %v2476 = vld [vmem:[%s350 + $0x12c] sm:$0xf]
          %v2477 = vld [vmem:[%s350 + $0x130] sm:$0xf]
          %v2478 = vld [vmem:[%s350 + $0x134] sm:$0xf]
          %v2479 = vld [vmem:[%s350 + $0x138] sm:$0xf]
          %v2480 = vld [vmem:[%s350 + $0x13c] sm:$0xf]
          %v2481 = vld [vmem:[%s350 + $0x140] sm:$0xf]
          %v2482 = vld [vmem:[%s350 + $0x144] sm:$0xf]
          %v2483 = vld [vmem:[%s350 + $0x148] sm:$0xf]
          %v2484 = vld [vmem:[%s350 + $0x14c] sm:$0xf]
          %v2485 = vld [vmem:[%s350 + $0x150] sm:$0xf]
          %v2486 = vld [vmem:[%s350 + $0x154] sm:$0xf]
          %v2487 = vld [vmem:[%s350 + $0x158] sm:$0xf]
          %v2488 = vld [vmem:[%s350 + $0x15c] sm:$0xf]
          %v2489 = vld [vmem:[%s350 + $0x160] sm:$0xf]
          %v2490 = vld [vmem:[%s350 + $0x164] sm:$0xf]
          %v2491 = vld [vmem:[%s350 + $0x168] sm:$0xf]
          %v2492 = vld [vmem:[%s350 + $0x16c] sm:$0xf]
          %v2493 = vld [vmem:[%s350 + $0x170] sm:$0xf]
          %v2494 = vld [vmem:[%s350 + $0x174] sm:$0xf]
          %v2495 = vld [vmem:[%s350 + $0x178] sm:$0xf]
          %v2496 = vld [vmem:[%s350 + $0x17c] sm:$0xf]
          %v2497 = vld [vmem:[%s350 + $0x180] sm:$0xf]
          %v2498 = vld [vmem:[%s350 + $0x184] sm:$0xf]
          %v2499 = vld [vmem:[%s350 + $0x188] sm:$0xf]
          %v2500 = vld [vmem:[%s350 + $0x18c] sm:$0xf]
          %v2501 = vld [vmem:[%s350 + $0x190] sm:$0xf]
          %v2502 = vld [vmem:[%s350 + $0x194] sm:$0xf]
          %v2503 = vld [vmem:[%s350 + $0x198] sm:$0xf]
          %v2504 = vld [vmem:[%s350 + $0x19c] sm:$0xf]
          %v2505 = vld [vmem:[%s350 + $0x1a0] sm:$0xf]
          %v2506 = vld [vmem:[%s350 + $0x1a4] sm:$0xf]
          %v2507 = vld [vmem:[%s350 + $0x1a8] sm:$0xf]
          %v2508 = vld [vmem:[%s350 + $0x1ac] sm:$0xf]
          %v2509 = vld [vmem:[%s350 + $0x1b0] sm:$0xf]
          %v2510 = vld [vmem:[%s350 + $0x1b4] sm:$0xf]
          %v2511 = vld [vmem:[%s350 + $0x1b8] sm:$0xf]
          %v2512 = vld [vmem:[%s350 + $0x1bc] sm:$0xf]
          %v2513 = vld [vmem:[%s350 + $0x1c0] sm:$0xf]
          %v2514 = vld [vmem:[%s350 + $0x1c4] sm:$0xf]
          %v2515 = vld [vmem:[%s350 + $0x1c8] sm:$0xf]
          %v2516 = vld [vmem:[%s350 + $0x1cc] sm:$0xf]
          %v2517 = vld [vmem:[%s350 + $0x1d0] sm:$0xf]
          %v2518 = vld [vmem:[%s350 + $0x1d4] sm:$0xf]
          %v2519 = vld [vmem:[%s350 + $0x1d8] sm:$0xf]
          %v2520 = vld [vmem:[%s350 + $0x1dc] sm:$0xf]
          %v2521 = vld [vmem:[%s350 + $0x1e0] sm:$0xf]
          %v2522 = vld [vmem:[%s350 + $0x1e4] sm:$0xf]
          %v2523 = vld [vmem:[%s350 + $0x1e8] sm:$0xf]
          %v2524 = vld [vmem:[%s350 + $0x1ec] sm:$0xf]
          %v2525 = vld [vmem:[%s350 + $0x1f0] sm:$0xf]
          %v2526 = vld [vmem:[%s350 + $0x1f4] sm:$0xf]
          %v2527 = vld [vmem:[%s350 + $0x1f8] sm:$0xf]
          %v2528 = vld [vmem:[%s350 + $0x1fc] sm:$0xf]
          %v2529 = vld [vmem:[%s358] sm:$0x1]
          %v2531 = vlaneseq
          %v2532 = vshrl.u32 %v2531, 7
          %v2533 = vsub.s32 0, %v2532
          %v2534 = vrot.slane %v2529, %v2533
          %v2664 = vunpack.c.l.b16 %v2401
          %v2665 = vunpack.c.l.b16 %v2402
          %v2666 = vunpack.c.l.b16 %v2403
          %v2667 = vunpack.c.l.b16 %v2404
          %v2668 = vunpack.c.l.b16 %v2405
          %v2669 = vunpack.c.l.b16 %v2406
          %v2670 = vunpack.c.l.b16 %v2407
          %v2671 = vunpack.c.l.b16 %v2408
          %v2672 = vunpack.c.l.b16 %v2409
          %v2673 = vunpack.c.l.b16 %v2410
          %v2674 = vunpack.c.l.b16 %v2411
          %v2675 = vunpack.c.l.b16 %v2412
          %v2676 = vunpack.c.l.b16 %v2413
          %v2677 = vunpack.c.l.b16 %v2414
          %v2678 = vunpack.c.l.b16 %v2415
          %v2679 = vunpack.c.l.b16 %v2416
          %v2680 = vunpack.c.l.b16 %v2417
          %v2681 = vunpack.c.l.b16 %v2418
          %v2682 = vunpack.c.l.b16 %v2419
          %v2683 = vunpack.c.l.b16 %v2420
          %v2684 = vunpack.c.l.b16 %v2421
          %v2685 = vunpack.c.l.b16 %v2422
          %v2686 = vunpack.c.l.b16 %v2423
          %v2687 = vunpack.c.l.b16 %v2424
          %v2688 = vunpack.c.l.b16 %v2425
          %v2689 = vunpack.c.l.b16 %v2426
          %v2690 = vunpack.c.l.b16 %v2427
          %v2691 = vunpack.c.l.b16 %v2428
          %v2692 = vunpack.c.l.b16 %v2429
          %v2693 = vunpack.c.l.b16 %v2430
          %v2694 = vunpack.c.l.b16 %v2431
          %v2695 = vunpack.c.l.b16 %v2432
          %v2696 = vunpack.c.l.b16 %v2433
          %v2697 = vunpack.c.l.b16 %v2434
          %v2698 = vunpack.c.l.b16 %v2435
          %v2699 = vunpack.c.l.b16 %v2436
          %v2700 = vunpack.c.l.b16 %v2437
          %v2701 = vunpack.c.l.b16 %v2438
          %v2702 = vunpack.c.l.b16 %v2439
          %v2703 = vunpack.c.l.b16 %v2440
          %v2704 = vunpack.c.l.b16 %v2441
          %v2705 = vunpack.c.l.b16 %v2442
          %v2706 = vunpack.c.l.b16 %v2443
          %v2707 = vunpack.c.l.b16 %v2444
          %v2708 = vunpack.c.l.b16 %v2445
          %v2709 = vunpack.c.l.b16 %v2446
          %v2710 = vunpack.c.l.b16 %v2447
          %v2711 = vunpack.c.l.b16 %v2448
          %v2712 = vunpack.c.l.b16 %v2449
          %v2713 = vunpack.c.l.b16 %v2450
          %v2714 = vunpack.c.l.b16 %v2451
          %v2715 = vunpack.c.l.b16 %v2452
          %v2716 = vunpack.c.l.b16 %v2453
          %v2717 = vunpack.c.l.b16 %v2454
          %v2718 = vunpack.c.l.b16 %v2455
          %v2719 = vunpack.c.l.b16 %v2456
          %v2720 = vunpack.c.l.b16 %v2457
          %v2721 = vunpack.c.l.b16 %v2458
          %v2722 = vunpack.c.l.b16 %v2459
          %v2723 = vunpack.c.l.b16 %v2460
          %v2724 = vunpack.c.l.b16 %v2461
          %v2725 = vunpack.c.l.b16 %v2462
          %v2726 = vunpack.c.l.b16 %v2463
          %v2727 = vunpack.c.l.b16 %v2464
          %v2728 = vunpack.c.l.b16 %v2465
          %v2729 = vunpack.c.l.b16 %v2466
          %v2730 = vunpack.c.l.b16 %v2467
          %v2731 = vunpack.c.l.b16 %v2468
          %v2732 = vunpack.c.l.b16 %v2469
          %v2733 = vunpack.c.l.b16 %v2470
          %v2734 = vunpack.c.l.b16 %v2471
          %v2735 = vunpack.c.l.b16 %v2472
          %v2736 = vunpack.c.l.b16 %v2473
          %v2737 = vunpack.c.l.b16 %v2474
          %v2738 = vunpack.c.l.b16 %v2475
          %v2739 = vunpack.c.l.b16 %v2476
          %v2740 = vunpack.c.l.b16 %v2477
          %v2741 = vunpack.c.l.b16 %v2478
          %v2742 = vunpack.c.l.b16 %v2479
          %v2743 = vunpack.c.l.b16 %v2480
          %v2744 = vunpack.c.l.b16 %v2481
          %v2745 = vunpack.c.l.b16 %v2482
          %v2746 = vunpack.c.l.b16 %v2483
          %v2747 = vunpack.c.l.b16 %v2484
          %v2748 = vunpack.c.l.b16 %v2485
          %v2749 = vunpack.c.l.b16 %v2486
          %v2750 = vunpack.c.l.b16 %v2487
          %v2751 = vunpack.c.l.b16 %v2488
          %v2752 = vunpack.c.l.b16 %v2489
          %v2753 = vunpack.c.l.b16 %v2490
          %v2754 = vunpack.c.l.b16 %v2491
          %v2755 = vunpack.c.l.b16 %v2492
          %v2756 = vunpack.c.l.b16 %v2493
          %v2757 = vunpack.c.l.b16 %v2494
          %v2758 = vunpack.c.l.b16 %v2495
          %v2759 = vunpack.c.l.b16 %v2496
          %v2760 = vunpack.c.l.b16 %v2497
          %v2761 = vunpack.c.l.b16 %v2498
          %v2762 = vunpack.c.l.b16 %v2499
          %v2763 = vunpack.c.l.b16 %v2500
          %v2764 = vunpack.c.l.b16 %v2501
          %v2765 = vunpack.c.l.b16 %v2502
          %v2766 = vunpack.c.l.b16 %v2503
          %v2767 = vunpack.c.l.b16 %v2504
          %v2768 = vunpack.c.l.b16 %v2505
          %v2769 = vunpack.c.l.b16 %v2506
          %v2770 = vunpack.c.l.b16 %v2507
          %v2771 = vunpack.c.l.b16 %v2508
          %v2772 = vunpack.c.l.b16 %v2509
          %v2773 = vunpack.c.l.b16 %v2510
          %v2774 = vunpack.c.l.b16 %v2511
          %v2775 = vunpack.c.l.b16 %v2512
          %v2776 = vunpack.c.l.b16 %v2513
          %v2777 = vunpack.c.l.b16 %v2514
          %v2778 = vunpack.c.l.b16 %v2515
          %v2779 = vunpack.c.l.b16 %v2516
          %v2780 = vunpack.c.l.b16 %v2517
          %v2781 = vunpack.c.l.b16 %v2518
          %v2782 = vunpack.c.l.b16 %v2519
          %v2783 = vunpack.c.l.b16 %v2520
          %v2784 = vunpack.c.l.b16 %v2521
          %v2785 = vunpack.c.l.b16 %v2522
          %v2786 = vunpack.c.l.b16 %v2523
          %v2787 = vunpack.c.l.b16 %v2524
          %v2788 = vunpack.c.l.b16 %v2525
          %v2789 = vunpack.c.l.b16 %v2526
          %v2790 = vunpack.c.l.b16 %v2527
          %v2791 = vunpack.c.l.b16 %v2528
          %v2792 = vpack.c.b16 %v2665, %v2664
          %v2793 = vpack.c.b16 %v2667, %v2666
          %v2794 = vpack.c.b16 %v2669, %v2668
          %v2795 = vpack.c.b16 %v2671, %v2670
          %v2796 = vpack.c.b16 %v2673, %v2672
          %v2797 = vpack.c.b16 %v2675, %v2674
          %v2798 = vpack.c.b16 %v2677, %v2676
          %v2799 = vpack.c.b16 %v2679, %v2678
          %v2800 = vpack.c.b16 %v2681, %v2680
          %v2801 = vpack.c.b16 %v2683, %v2682
          %v2802 = vpack.c.b16 %v2685, %v2684
          %v2803 = vpack.c.b16 %v2687, %v2686
          %v2804 = vpack.c.b16 %v2689, %v2688
          %v2805 = vpack.c.b16 %v2691, %v2690
          %v2806 = vpack.c.b16 %v2693, %v2692
          %v2807 = vpack.c.b16 %v2695, %v2694
          %v2808 = vpack.c.b16 %v2697, %v2696
          %v2809 = vpack.c.b16 %v2699, %v2698
          %v2810 = vpack.c.b16 %v2701, %v2700
          %v2811 = vpack.c.b16 %v2703, %v2702
          %v2812 = vpack.c.b16 %v2705, %v2704
          %v2813 = vpack.c.b16 %v2707, %v2706
          %v2814 = vpack.c.b16 %v2709, %v2708
          %v2815 = vpack.c.b16 %v2711, %v2710
          %v2816 = vpack.c.b16 %v2713, %v2712
          %v2817 = vpack.c.b16 %v2715, %v2714
          %v2818 = vpack.c.b16 %v2717, %v2716
          %v2819 = vpack.c.b16 %v2719, %v2718
          %v2820 = vpack.c.b16 %v2721, %v2720
          %v2821 = vpack.c.b16 %v2723, %v2722
          %v2822 = vpack.c.b16 %v2725, %v2724
          %v2823 = vpack.c.b16 %v2727, %v2726
          %v2824 = vpack.c.b16 %v2729, %v2728
          %v2825 = vpack.c.b16 %v2731, %v2730
          %v2826 = vpack.c.b16 %v2733, %v2732
          %v2827 = vpack.c.b16 %v2735, %v2734
          %v2828 = vpack.c.b16 %v2737, %v2736
          %v2829 = vpack.c.b16 %v2739, %v2738
          %v2830 = vpack.c.b16 %v2741, %v2740
          %v2831 = vpack.c.b16 %v2743, %v2742
          %v2832 = vpack.c.b16 %v2745, %v2744
          %v2833 = vpack.c.b16 %v2747, %v2746
          %v2834 = vpack.c.b16 %v2749, %v2748
          %v2835 = vpack.c.b16 %v2751, %v2750
          %v2836 = vpack.c.b16 %v2753, %v2752
          %v2837 = vpack.c.b16 %v2755, %v2754
          %v2838 = vpack.c.b16 %v2757, %v2756
          %v2839 = vpack.c.b16 %v2759, %v2758
          %v2840 = vpack.c.b16 %v2761, %v2760
          %v2841 = vpack.c.b16 %v2763, %v2762
          %v2842 = vpack.c.b16 %v2765, %v2764
          %v2843 = vpack.c.b16 %v2767, %v2766
          %v2844 = vpack.c.b16 %v2769, %v2768
          %v2845 = vpack.c.b16 %v2771, %v2770
          %v2846 = vpack.c.b16 %v2773, %v2772
          %v2847 = vpack.c.b16 %v2775, %v2774
          %v2848 = vpack.c.b16 %v2777, %v2776
          %v2849 = vpack.c.b16 %v2779, %v2778
          %v2850 = vpack.c.b16 %v2781, %v2780
          %v2851 = vpack.c.b16 %v2783, %v2782
          %v2852 = vpack.c.b16 %v2785, %v2784
          %v2853 = vpack.c.b16 %v2787, %v2786
          %v2854 = vpack.c.b16 %v2789, %v2788
          %v2855 = vpack.c.b16 %v2791, %v2790
          %2920 = vmatprep.subr.bf16.mxu0 0
          %2921 = vmatpush1.bf16.msra.mxu0 %v2799
          %2922 = vmatprep.subr.bf16.mxu0 0
          %2923 = vmatpush1.bf16.msra.mxu0 %v2798
          %2924 = vmatprep.subr.bf16.mxu0 0
          %2925 = vmatpush1.bf16.msra.mxu0 %v2797
          %2926 = vmatprep.subr.bf16.mxu0 0
          %2927 = vmatpush1.bf16.msra.mxu0 %v2796
          %2928 = vmatprep.subr.bf16.mxu0 0
          %2929 = vmatpush1.bf16.msra.mxu0 %v2795
          %2930 = vmatprep.subr.bf16.mxu0 0
          %2931 = vmatpush1.bf16.msra.mxu0 %v2794
          %2932 = vmatprep.subr.bf16.mxu0 0
          %2933 = vmatpush1.bf16.msra.mxu0 %v2793
          %2934 = vmatprep.subr.bf16.mxu0 0
          %2935 = vmatpush1.bf16.msra.mxu0 %v2792
          %2936 = vmatprep.subr.bf16.mxu0 0
          %2937 = vmatpush2.bf16.msra.mxu0 %v2807
          %2938 = vmatprep.subr.bf16.mxu0 0
          %2939 = vmatpush2.bf16.msra.mxu0 %v2806
          %2940 = vmatprep.subr.bf16.mxu0 0
          %2941 = vmatpush2.bf16.msra.mxu0 %v2805
          %2942 = vmatprep.subr.bf16.mxu0 0
          %2943 = vmatpush2.bf16.msra.mxu0 %v2804
          %2944 = vmatprep.subr.bf16.mxu0 0
          %2945 = vmatpush2.bf16.msra.mxu0 %v2803
          %2946 = vmatprep.subr.bf16.mxu0 0
          %2947 = vmatpush2.bf16.msra.mxu0 %v2802
          %2948 = vmatprep.subr.bf16.mxu0 0
          %2949 = vmatpush2.bf16.msra.mxu0 %v2801
          %2950 = vmatprep.subr.bf16.mxu0 0
          %2951 = vmatpush2.bf16.msra.mxu0 %v2800
          %2952 = vmatprep.mubr.bf16.mxu0 %v2394
          %2953 = vmatmul.mubr.bf16.gmra.mxu0 %v2393
          %v2954 = vpop.f32.mrf.mxu0
          %v2955 = vadd.f32 %v2534, %v2954
          %v2956 = vpop.f32.mrf.mxu0
          %v2957 = vpop.f32.mrf.mxu0
          %v2958 = vpop.f32.mrf.mxu0
          %2959 = vdwg.mxu0
          %2960 = vmatprep.subr.bf16.mxu0 0
          %2961 = vmatpush1.bf16.msra.mxu0 %v2815
          %2962 = vmatprep.subr.bf16.mxu0 0
          %2963 = vmatpush1.bf16.msra.mxu0 %v2814
          %2964 = vmatprep.subr.bf16.mxu0 0
          %2965 = vmatpush1.bf16.msra.mxu0 %v2813
          %2966 = vmatprep.subr.bf16.mxu0 0
          %2967 = vmatpush1.bf16.msra.mxu0 %v2812
          %2968 = vmatprep.subr.bf16.mxu0 0
          %2969 = vmatpush1.bf16.msra.mxu0 %v2811
          %2970 = vmatprep.subr.bf16.mxu0 0
          %2971 = vmatpush1.bf16.msra.mxu0 %v2810
          %2972 = vmatprep.subr.bf16.mxu0 0
          %2973 = vmatpush1.bf16.msra.mxu0 %v2809
          %2974 = vmatprep.subr.bf16.mxu0 0
          %2975 = vmatpush1.bf16.msra.mxu0 %v2808
          %2976 = vmatprep.subr.bf16.mxu0 0
          %2977 = vmatpush2.bf16.msra.mxu0 %v2823
          %2978 = vmatprep.subr.bf16.mxu0 0
          %2979 = vmatpush2.bf16.msra.mxu0 %v2822
          %2980 = vmatprep.subr.bf16.mxu0 0
          %2981 = vmatpush2.bf16.msra.mxu0 %v2821
          %2982 = vmatprep.subr.bf16.mxu0 0
          %2983 = vmatpush2.bf16.msra.mxu0 %v2820
          %2984 = vmatprep.subr.bf16.mxu0 0
          %2985 = vmatpush2.bf16.msra.mxu0 %v2819
          %2986 = vmatprep.subr.bf16.mxu0 0
          %2987 = vmatpush2.bf16.msra.mxu0 %v2818
          %2988 = vmatprep.subr.bf16.mxu0 0
          %2989 = vmatpush2.bf16.msra.mxu0 %v2817
          %2990 = vmatprep.subr.bf16.mxu0 0
          %2991 = vmatpush2.bf16.msra.mxu0 %v2816
          %2992 = vmatprep.mubr.bf16.mxu0 %v2396
          %2993 = vmatmul.mubr.bf16.gmra.mxu0 %v2395
          %v2994 = vpop.f32.mrf.mxu0
          %v2995 = vadd.f32 %v2955, %v2994
          %v2996 = vpop.f32.mrf.mxu0
          %v2997 = vpop.f32.mrf.mxu0
          %v2998 = vpop.f32.mrf.mxu0
          %2999 = vdwg.mxu0
          %3000 = vmatprep.subr.bf16.mxu0 0
          %3001 = vmatpush1.bf16.msra.mxu0 %v2831
          %3002 = vmatprep.subr.bf16.mxu0 0
          %3003 = vmatpush1.bf16.msra.mxu0 %v2830
          %3004 = vmatprep.subr.bf16.mxu0 0
          %3005 = vmatpush1.bf16.msra.mxu0 %v2829
          %3006 = vmatprep.subr.bf16.mxu0 0
          %3007 = vmatpush1.bf16.msra.mxu0 %v2828
          %3008 = vmatprep.subr.bf16.mxu0 0
          %3009 = vmatpush1.bf16.msra.mxu0 %v2827
          %3010 = vmatprep.subr.bf16.mxu0 0
          %3011 = vmatpush1.bf16.msra.mxu0 %v2826
          %3012 = vmatprep.subr.bf16.mxu0 0
          %3013 = vmatpush1.bf16.msra.mxu0 %v2825
          %3014 = vmatprep.subr.bf16.mxu0 0
          %3015 = vmatpush1.bf16.msra.mxu0 %v2824
          %3016 = vmatprep.subr.bf16.mxu0 0
          %3017 = vmatpush2.bf16.msra.mxu0 %v2839
          %3018 = vmatprep.subr.bf16.mxu0 0
          %3019 = vmatpush2.bf16.msra.mxu0 %v2838
          %3020 = vmatprep.subr.bf16.mxu0 0
          %3021 = vmatpush2.bf16.msra.mxu0 %v2837
          %3022 = vmatprep.subr.bf16.mxu0 0
          %3023 = vmatpush2.bf16.msra.mxu0 %v2836
          %3024 = vmatprep.subr.bf16.mxu0 0
          %3025 = vmatpush2.bf16.msra.mxu0 %v2835
          %3026 = vmatprep.subr.bf16.mxu0 0
          %3027 = vmatpush2.bf16.msra.mxu0 %v2834
          %3028 = vmatprep.subr.bf16.mxu0 0
          %3029 = vmatpush2.bf16.msra.mxu0 %v2833
          %3030 = vmatprep.subr.bf16.mxu0 0
          %3031 = vmatpush2.bf16.msra.mxu0 %v2832
          %3032 = vmatprep.mubr.bf16.mxu0 %v2398
          %3033 = vmatmul.mubr.bf16.gmra.mxu0 %v2397
          %v3034 = vpop.f32.mrf.mxu0
          %v3035 = vadd.f32 %v2995, %v3034
          %v3036 = vpop.f32.mrf.mxu0
          %v3037 = vpop.f32.mrf.mxu0
          %v3038 = vpop.f32.mrf.mxu0
          %3039 = vdwg.mxu0
          %3040 = vmatprep.subr.bf16.mxu0 0
          %3041 = vmatpush1.bf16.msra.mxu0 %v2847
          %3042 = vmatprep.subr.bf16.mxu0 0
          %3043 = vmatpush1.bf16.msra.mxu0 %v2846
          %3044 = vmatprep.subr.bf16.mxu0 0
          %3045 = vmatpush1.bf16.msra.mxu0 %v2845
          %3046 = vmatprep.subr.bf16.mxu0 0
          %3047 = vmatpush1.bf16.msra.mxu0 %v2844
          %3048 = vmatprep.subr.bf16.mxu0 0
          %3049 = vmatpush1.bf16.msra.mxu0 %v2843
          %3050 = vmatprep.subr.bf16.mxu0 0
          %3051 = vmatpush1.bf16.msra.mxu0 %v2842
          %3052 = vmatprep.subr.bf16.mxu0 0
          %3053 = vmatpush1.bf16.msra.mxu0 %v2841
          %3054 = vmatprep.subr.bf16.mxu0 0
          %3055 = vmatpush1.bf16.msra.mxu0 %v2840
          %3056 = vmatprep.subr.bf16.mxu0 0
          %3057 = vmatpush2.bf16.msra.mxu0 %v2855
          %3058 = vmatprep.subr.bf16.mxu0 0
          %3059 = vmatpush2.bf16.msra.mxu0 %v2854
          %3060 = vmatprep.subr.bf16.mxu0 0
          %3061 = vmatpush2.bf16.msra.mxu0 %v2853
          %3062 = vmatprep.subr.bf16.mxu0 0
          %3063 = vmatpush2.bf16.msra.mxu0 %v2852
          %3064 = vmatprep.subr.bf16.mxu0 0
          %3065 = vmatpush2.bf16.msra.mxu0 %v2851
          %3066 = vmatprep.subr.bf16.mxu0 0
          %3067 = vmatpush2.bf16.msra.mxu0 %v2850
          %3068 = vmatprep.subr.bf16.mxu0 0
          %3069 = vmatpush2.bf16.msra.mxu0 %v2849
          %3070 = vmatprep.subr.bf16.mxu0 0
          %3071 = vmatpush2.bf16.msra.mxu0 %v2848
          %3072 = vmatprep.mubr.bf16.mxu0 %v2400
          %3073 = vmatmul.mubr.bf16.gmra.mxu0 %v2399
          %v3074 = vpop.f32.mrf.mxu0
          %v3075 = vadd.f32 %v3035, %v3074
          %v3076 = vpop.f32.mrf.mxu0
          %v3077 = vpop.f32.mrf.mxu0
          %v3078 = vpop.f32.mrf.mxu0
          %3079 = vdwg.mxu0
          %3080 = vst [vmem:[%s403] sm:$0xff] %v3075
        $region68: #{tpu_custom_call.1} parent=39 // pred_fallthru
          _
        %s3081 = sand.u32 %s180, 1
        %s3082 = scalar_lea.sflag [#allocation5], %s3081
        %s3083 = sand.u32 %s180, 1
        %s3084 = smul.addr %s3083, 8
        %s3085 = scalar_lea.vmem [#allocation12], %s3084
        // Predicated region
        $region69: #{tpu_custom_call.1} parent=39 // pred_check
          %p3086 = pneg %p190
        $region70: #{tpu_custom_call.1} parent=39 // pred_check_branch
          %3088 = sbr.rel (%p3086) target = $region72
        $region71: #{tpu_custom_call.1} parent=39 // pred_region
          %s3090 = ssub.s32 128, 128
          %3091 = vsyncadd %s3082, %s3090
          %s3092 = smul.addr %s32, 128
          %s3093 = scalar_lea.hbm %s5, %s3092
          %s3095 = sshll.u32 %s3085, 4
          %s3096 = int_to_ptr.vmem [resolvable:$true] %s3095
          %3098 = dma.vmem_to_hbm [thread:$0]  %s3096, 128, %s3093, %s3082
        $region72: #{tpu_custom_call.1} parent=39 // pred_fallthru
          _
      $region40: #{tpu_custom_call.1} parent=5 // pred_fallthru
        _
      %p3099 = scmp.le.s32.totalorder 2, %s23
      // Predicated region
      $region73: #{tpu_custom_call.1} parent=5 // pred_check
        %p3100 = pneg %p3099
      $region74: #{tpu_custom_call.1} parent=5 // pred_check_branch
        %3102 = sbr.rel (%p3100) target = $region76
      $region75: #{tpu_custom_call.1} parent=5 // pred_region
        %s3103 = ssub.s32 %s23, 2
        // Predicated region
        $region77: #{tpu_custom_call.1} parent=75 // pred_check
          %p3104 = pneg %p196
        $region78: #{tpu_custom_call.1} parent=75 // pred_check_branch
          %3106 = sbr.rel (%p3104) target = $region80
        $region79: #{tpu_custom_call.1} parent=75 // pred_region
          %s3107 = sand.u32 %s181, 1
          %s3108 = scalar_lea.sflag [#allocation5], %s3107
          %s3109 = sand.u32 %s181, 1
          %s3110 = smul.addr %s3109, 8
          %s3111 = scalar_lea.vmem [#allocation12], %s3110
          %3112 = dma.done %s3108, 128
        $region80: #{tpu_custom_call.1} parent=75 // pred_fallthru
          _
      $region76: #{tpu_custom_call.1} parent=5 // pred_fallthru
        _
    $region6: #{tpu_custom_call.1} parent=1 // loop_footer
      %s27 = sadd.s32 1, %s23
    $region7: #{tpu_custom_call.1} parent=1 // loop_footer_branch
      %22 = sbr.rel target = $region3
    $region8: #{tpu_custom_call.1} parent=1 // loop_exit
      _
    %3113 = vsyncpa [#allocation4], 1
    %s3114 = scalar_lea.sflag [#allocation4], 1
    %3115 = vsyncpa %s3114, 1
    %3116 = vsyncpa [#allocation7], 1
    %s3117 = scalar_lea.sflag [#allocation7], 1
    %3118 = vsyncpa %s3117, 1
    %3119 = vsyncpa [#allocation10], 1
    %s3120 = scalar_lea.sflag [#allocation10], 1
    %3121 = vsyncpa %s3120, 1
    %3122 = vsyncpa [#allocation5], 1
    %s3123 = scalar_lea.sflag [#allocation5], 1
    %3124 = vsyncpa %s3123, 1

</llo_original>
